<compile_context>
chip_gen: v5e
topology: v5e:2x2
jax: 0.10.0
libtpu: 0.0.40
codegen_flags: <defaults>
</compile_context>

<pallas_src>
import math
import functools

import numpy as np
import jax
import jax.numpy as jnp
from jax import lax
from jax.experimental import pallas as pl
from jax.experimental.pallas import tpu as pltpu

# ----------------------------- tiny BERT config -----------------------------
VOCAB = 128
HIDDEN = 32
N_LAYERS = 2
N_HEADS = 4
HEAD_DIM = HIDDEN // N_HEADS          # 8
INTERMEDIATE = 64
MAX_POS = 16
TYPE_VOCAB = 2
NUM_LABELS = 1
LN_EPS = 1e-12

BATCH = 2
SEQ = 8


# ------------------------------ in-kernel helpers -----------------------------
def _layernorm(x, g, b):
    mean = jnp.mean(x, axis=-1, keepdims=True)
    var = jnp.mean((x - mean) ** 2, axis=-1, keepdims=True)
    inv = lax.rsqrt(var + LN_EPS)
    return (x - mean) * inv * g + b


def _gelu(x):
    # TODO(synk): HF BERT default is exact erf-GELU; erf has no guaranteed
    # Mosaic lowering, so the tanh approximation is used (deviation ~1e-3).
    c = math.sqrt(2.0 / math.pi)
    return 0.5 * x * (1.0 + jnp.tanh(c * (x + 0.044715 * x * x * x)))


# --------------------------- single fused Pallas kernel ------------------------
def _bert_kernel(ids_ref, tt_ref, mask_ref,
                 sel_ref, headmask_ref, segsum_ref, cross_ref,
                 possel_ref, clssel_ref,
                 word_emb_ref, pos_emb_ref, type_emb_ref,
                 emb_g_ref, emb_b_ref,
                 wqkv_ref, bqkv_ref, wo_ref, bo_ref,
                 ln1_g_ref, ln1_b_ref,
                 w1_ref, b1_ref, w2_ref, b2_ref,
                 ln2_g_ref, ln2_b_ref,
                 pool_w_ref, pool_b_ref,
                 head_w_ref, head_b_ref,
                 o_ref, *, batch, seq):
    f32 = jnp.float32
    H = HIDDEN
    T = batch * seq                      # flattened (batch, position) rows
    contract_last = (((1,), (1,)), ((), ()))   # A @ B^T

    # ---------------- fused embeddings (gather-as-matmul) ----------------
    ids = ids_ref[...]                                               # (T, 1) i32
    one_hot = (lax.broadcasted_iota(jnp.int32, (T, VOCAB), 1) == ids).astype(f32)
    emb = jnp.dot(one_hot, word_emb_ref[...], preferred_element_type=f32)       # (T, H)
    emb = emb + jnp.dot(possel_ref[...], pos_emb_ref[...],
                        preferred_element_type=f32)                             # + pos
    tt = tt_ref[...]                                                 # (T, 1) i32
    # TYPE_VOCAB == 2 -> token-type embedding is a simple select.
    emb = emb + jnp.where(tt == 0, type_emb_ref[0:1, :], type_emb_ref[1:2, :])
    x = _layernorm(emb, emb_g_ref[...], emb_b_ref[...])              # (T, H)

    # ---------------- hoisted structural / mask tensors ----------------
    sel = sel_ref[...]              # (R, T)  big-row -> source x-row selector
    headmask = headmask_ref[...]    # (R, H)  per-head column mask
    segsum = segsum_ref[...]        # (R, R)  block-diag ones per (batch, head)
    cross = cross_ref[...]          # (T, R)  1.0 where query/key batches differ

    # Additive key mask built ONCE (not per layer): 0 where same batch and the
    # key is unmasked, -1e9 otherwise (matches (1-mask)*-1e9 of the reference).
    attn_cols = lax.dot_general(mask_ref[...], sel, contract_last,
                                preferred_element_type=f32)          # (1, R)
    keep = (1.0 - cross) * attn_cols                                 # (T, R)
    amask = jnp.where(keep > 0.5, 0.0, -1e9)

    # ---------------- encoder layers ----------------
    for l in range(N_LAYERS):
        # Fused QKV projection (one MXU pass); 1/sqrt(dH) folded into Q at init.
        qkv = jnp.dot(x, wqkv_ref[l], preferred_element_type=f32) + bqkv_ref[l]  # (T, 3H)
        q = qkv[:, 0:H]                                                          # (T, H)

        # Replicate K/V per head into (R, H) and keep only that head's columns.
        k_big = jnp.dot(sel, qkv[:, H:2 * H],
                        preferred_element_type=f32) * headmask                   # (R, H)
        v_big = jnp.dot(sel, qkv[:, 2 * H:3 * H],
                        preferred_element_type=f32) * headmask                   # (R, H)

        # All-batch, all-head scores in one matmul; dead blocks masked to -1e9.
        s = lax.dot_general(q, k_big, contract_last,
                            preferred_element_type=f32) + amask                  # (T, R)
        # Row-wide max (spans all heads of this query) -- cancels exactly in the
        # per-head normalization below, so the softmax result is unchanged.
        s = s - jnp.max(s, axis=-1, keepdims=True)
        p = jnp.exp(s)                                                            # (T, R)
        # Per-(batch, head) softmax denominator via a block-diagonal matmul;
        # '+ cross' keeps statically-dead cross-batch columns at denom=1.
        denom = jnp.dot(p, segsum, preferred_element_type=f32) + cross
        p = p * pl.reciprocal(denom, approx=True)
        # Context: heads land already concatenated in lane order (no concat).
        ctx = jnp.dot(p, v_big, preferred_element_type=f32)                       # (T, H)

        attn_out = jnp.dot(ctx, wo_ref[l], preferred_element_type=f32) + bo_ref[l]
        x = _layernorm(attn_out + x, ln1_g_ref[l], ln1_b_ref[l])    # post-attn LN (+res)

        ffn = _gelu(jnp.dot(x, w1_ref[l], preferred_element_type=f32) + b1_ref[l])
        ffn = jnp.dot(ffn, w2_ref[l], preferred_element_type=f32) + b2_ref[l]
        x = _layernorm(ffn + x, ln2_g_ref[l], ln2_b_ref[l])         # post-FFN LN (+res)

    # ---------------- pooler over [CLS] rows + regression head ----------------
    cls = jnp.dot(clssel_ref[...], x, preferred_element_type=f32)                # (B, H)
    pooled = jnp.tanh(jnp.dot(cls, pool_w_ref[...],
                              preferred_element_type=f32) + pool_b_ref[...])
    out = jnp.dot(pooled, head_w_ref[...],
                  preferred_element_type=f32) + head_b_ref[...]                  # (B, 1)
    o_ref[...] = out.astype(o_ref.dtype)


# ----------------------- static structural matrices (trace time) -----------------------
def _static_mats(batch, seq):
    """Constant selection / masking matrices; built once with numpy at trace time."""
    T = batch * seq
    R = batch * N_HEADS * seq
    r = np.arange(R)
    r_b = r // (N_HEADS * seq)                 # batch index of big-row
    r_h = (r // seq) % N_HEADS                 # head index of big-row
    r_k = r % seq                              # key position of big-row
    t = np.arange(T)
    t_b = t // seq
    t_s = t % seq

    sel = (t[None, :] == (r_b * seq + r_k)[:, None]).astype(np.float32)        # (R, T)
    headmask = ((np.arange(HIDDEN)[None, :] // HEAD_DIM)
                == r_h[:, None]).astype(np.float32)                            # (R, H)
    segsum = ((r[:, None] // seq) == (r[None, :] // seq)).astype(np.float32)   # (R, R)
    cross = (t_b[:, None] != r_b[None, :]).astype(np.float32)                  # (T, R)
    possel = (np.arange(MAX_POS)[None, :] == t_s[:, None]).astype(np.float32)  # (T, P)
    clssel = (t[None, :] == (np.arange(batch) * seq)[:, None]).astype(np.float32)  # (B, T)
    return [jnp.asarray(m) for m in (sel, headmask, segsum, cross, possel, clssel)]


# --------------------------------- parameters ---------------------------------
def init_params(key):
    keys = iter(jax.random.split(key, 64))

    def w(shape, scale=0.02):
        return scale * jax.random.normal(next(keys), shape, dtype=jnp.float32)

    zeros = lambda s: jnp.zeros(s, jnp.float32)
    ones = lambda s: jnp.ones(s, jnp.float32)

    layers = []
    for _ in range(N_LAYERS):
        layers.append(dict(
            wq=w((HIDDEN, HIDDEN)), bq=zeros((HIDDEN,)),
            wk=w((HIDDEN, HIDDEN)), bk=zeros((HIDDEN,)),
            wv=w((HIDDEN, HIDDEN)), bv=zeros((HIDDEN,)),
            wo=w((HIDDEN, HIDDEN)), bo=zeros((HIDDEN,)),
            ln1_g=ones((HIDDEN,)), ln1_b=zeros((HIDDEN,)),
            w1=w((HIDDEN, INTERMEDIATE)), b1=zeros((INTERMEDIATE,)),
            w2=w((INTERMEDIATE, HIDDEN)), b2=zeros((HIDDEN,)),
            ln2_g=ones((HIDDEN,)), ln2_b=zeros((HIDDEN,)),
        ))

    # Pack / fuse once at init: fused QKV with the 1/sqrt(dH) attention scale
    # folded into the Q block (weights AND bias), per-layer stacking, 2-D bias rows.
    inv_s = 1.0 / math.sqrt(HEAD_DIM)
    packed = {
        "word_emb": w((VOCAB, HIDDEN)),
        "pos_emb": w((MAX_POS, HIDDEN)),
        "type_emb": w((TYPE_VOCAB, HIDDEN)),
        "emb_ln_g": ones((1, HIDDEN)),
        "emb_ln_b": zeros((1, HIDDEN)),
        "wqkv": jnp.stack([jnp.concatenate(
            [lp["wq"] * inv_s, lp["wk"], lp["wv"]], axis=1) for lp in layers]),   # (L, H, 3H)
        "bqkv": jnp.stack([jnp.concatenate(
            [lp["bq"] * inv_s, lp["bk"], lp["bv"]])[None, :] for lp in layers]),  # (L, 1, 3H)
        "wo": jnp.stack([lp["wo"] for lp in layers]),                    # (L, H, H)
        "bo": jnp.stack([lp["bo"][None, :] for lp in layers]),           # (L, 1, H)
        "ln1_g": jnp.stack([lp["ln1_g"][None, :] for lp in layers]),
        "ln1_b": jnp.stack([lp["ln1_b"][None, :] for lp in layers]),
        "w1": jnp.stack([lp["w1"] for lp in layers]),                    # (L, H, I)
        "b1": jnp.stack([lp["b1"][None, :] for lp in layers]),           # (L, 1, I)
        "w2": jnp.stack([lp["w2"] for lp in layers]),                    # (L, I, H)
        "b2": jnp.stack([lp["b2"][None, :] for lp in layers]),           # (L, 1, H)
        "ln2_g": jnp.stack([lp["ln2_g"][None, :] for lp in layers]),
        "ln2_b": jnp.stack([lp["ln2_b"][None, :] for lp in layers]),
        "pooler_w": w((HIDDEN, HIDDEN)),
        "pooler_b": zeros((1, HIDDEN)),
        "head_w": w((HIDDEN, NUM_LABELS)),
        "head_b": zeros((1, NUM_LABELS)),
    }
    return packed


# ---------------------------------- forward -----------------------------------
def bert_for_regression(params, input_ids, attention_mask, token_type_ids):
    B, S = input_ids.shape

    # Only trivial reshapes/casts remain outside the kernel.
    ids = input_ids.reshape(B * S, 1).astype(jnp.int32)
    tt = token_type_ids.reshape(B * S, 1).astype(jnp.int32)
    mask = attention_mask.reshape(1, B * S).astype(jnp.float32)
    statics = _static_mats(B, S)                     # numpy -> compile-time constants

    vmem = pl.BlockSpec(memory_space=pltpu.MemorySpace.VMEM)
    kernel = functools.partial(_bert_kernel, batch=B, seq=S)
    n_in = 3 + len(statics) + 21

    out = pl.pallas_call(
        kernel,
        out_shape=jax.ShapeDtypeStruct((B, NUM_LABELS), jnp.float32),
        in_specs=[vmem] * n_in,
        out_specs=vmem,
    )(ids, tt, mask, *statics,
      params["word_emb"], params["pos_emb"], params["type_emb"],
      params["emb_ln_g"], params["emb_ln_b"],
      params["wqkv"], params["bqkv"], params["wo"], params["bo"],
      params["ln1_g"], params["ln1_b"],
      params["w1"], params["b1"], params["w2"], params["b2"],
      params["ln2_g"], params["ln2_b"],
      params["pooler_w"], params["pooler_b"],
      params["head_w"], params["head_b"])

    return jnp.squeeze(out, axis=1)                  # (B,)


# ------------------------------------ main -------------------------------------
if __name__ == "__main__":
    key = jax.random.PRNGKey(0)
    k_param, k_ids, k_types = jax.random.split(key, 3)

    params = init_params(k_param)

    input_ids = jax.random.randint(k_ids, (BATCH, SEQ), 0, VOCAB, dtype=jnp.int32)
    token_type_ids = jax.random.randint(k_types, (BATCH, SEQ), 0, TYPE_VOCAB,
                                        dtype=jnp.int32)
    attention_mask = jnp.array(
        [[1, 1, 1, 1, 1, 1, 1, 1],
         [1, 1, 1, 1, 1, 1, 0, 0]], dtype=jnp.int32)

    fwd = jax.jit(bert_for_regression)
    out = fwd(params, input_ids, attention_mask, token_type_ids)
    out = jax.block_until_ready(out)
    assert out.shape == (BATCH,)
    print("KERNEL_OK")
</pallas_src>

<mosaic_0001>
module attributes {stable_mosaic.version = 11 : i64} {
  func.func @_bert_kernel(%arg0: memref<16x1xi32, #tpu.memory_space<vmem>>, %arg1: memref<16x1xi32, #tpu.memory_space<vmem>>, %arg2: memref<1x16xf32, #tpu.memory_space<vmem>>, %arg3: memref<64x16xf32, #tpu.memory_space<vmem>>, %arg4: memref<64x32xf32, #tpu.memory_space<vmem>>, %arg5: memref<64x64xf32, #tpu.memory_space<vmem>>, %arg6: memref<16x64xf32, #tpu.memory_space<vmem>>, %arg7: memref<16x16xf32, #tpu.memory_space<vmem>>, %arg8: memref<2x16xf32, #tpu.memory_space<vmem>>, %arg9: memref<128x32xf32, #tpu.memory_space<vmem>>, %arg10: memref<16x32xf32, #tpu.memory_space<vmem>>, %arg11: memref<2x32xf32, #tpu.memory_space<vmem>>, %arg12: memref<1x32xf32, #tpu.memory_space<vmem>>, %arg13: memref<1x32xf32, #tpu.memory_space<vmem>>, %arg14: memref<2x32x96xf32, #tpu.memory_space<vmem>>, %arg15: memref<2x1x96xf32, #tpu.memory_space<vmem>>, %arg16: memref<2x32x32xf32, #tpu.memory_space<vmem>>, %arg17: memref<2x1x32xf32, #tpu.memory_space<vmem>>, %arg18: memref<2x1x32xf32, #tpu.memory_space<vmem>>, %arg19: memref<2x1x32xf32, #tpu.memory_space<vmem>>, %arg20: memref<2x32x64xf32, #tpu.memory_space<vmem>>, %arg21: memref<2x1x64xf32, #tpu.memory_space<vmem>>, %arg22: memref<2x64x32xf32, #tpu.memory_space<vmem>>, %arg23: memref<2x1x32xf32, #tpu.memory_space<vmem>>, %arg24: memref<2x1x32xf32, #tpu.memory_space<vmem>>, %arg25: memref<2x1x32xf32, #tpu.memory_space<vmem>>, %arg26: memref<32x32xf32, #tpu.memory_space<vmem>>, %arg27: memref<1x32xf32, #tpu.memory_space<vmem>>, %arg28: memref<32x1xf32, #tpu.memory_space<vmem>>, %arg29: memref<1x1xf32, #tpu.memory_space<vmem>>, %arg30: memref<2x1xf32, #tpu.memory_space<vmem>>) attributes {dimension_semantics = [], scalar_prefetch = 0 : i64, scratch_operands = 0 : i64, tpu.core_type = #tpu.core_type<tc>} {
    %c0 = arith.constant 0 : index
    %c0_0 = arith.constant 0 : index
    %0 = vector.load %arg0[%c0, %c0_0] : memref<16x1xi32, #tpu.memory_space<vmem>>, vector<16x1xi32>
    %1 = tpu.iota {dimensions = array<i32: 1>} : vector<16x128xi32>
    %2 = vector.broadcast %0 : vector<16x1xi32> to vector<16x128xi32>
    %3 = arith.cmpi eq, %1, %2 : vector<16x128xi32>
    %4 = arith.extui %3 : vector<16x128xi1> to vector<16x128xi32>
    %5 = arith.sitofp %4 : vector<16x128xi32> to vector<16x128xf32>
    %c0_1 = arith.constant 0 : index
    %c0_2 = arith.constant 0 : index
    %6 = vector.load %arg9[%c0_1, %c0_2] : memref<128x32xf32, #tpu.memory_space<vmem>>, vector<128x32xf32>
    %cst = arith.constant dense<0.000000e+00> : vector<16x32xf32>
    %7 = tpu.matmul %5, %6, %cst {dimension_numbers = #tpu.dot_dimension_numbers<[1], [0], [0], [1], [0, 0, 1, 1], [], []>} : vector<16x128xf32>, vector<128x32xf32>, vector<16x32xf32> -> vector<16x32xf32>
    %c0_3 = arith.constant 0 : index
    %c0_4 = arith.constant 0 : index
    %8 = vector.load %arg7[%c0_3, %c0_4] : memref<16x16xf32, #tpu.memory_space<vmem>>, vector<16x16xf32>
    %c0_5 = arith.constant 0 : index
    %c0_6 = arith.constant 0 : index
    %9 = vector.load %arg10[%c0_5, %c0_6] : memref<16x32xf32, #tpu.memory_space<vmem>>, vector<16x32xf32>
    %cst_7 = arith.constant dense<0.000000e+00> : vector<16x32xf32>
    %10 = tpu.matmul %8, %9, %cst_7 {dimension_numbers = #tpu.dot_dimension_numbers<[1], [0], [0], [1], [0, 0, 1, 1], [], []>} : vector<16x16xf32>, vector<16x32xf32>, vector<16x32xf32> -> vector<16x32xf32>
    %11 = arith.addf %7, %10 : vector<16x32xf32>
    %c0_8 = arith.constant 0 : index
    %c0_9 = arith.constant 0 : index
    %12 = vector.load %arg1[%c0_8, %c0_9] : memref<16x1xi32, #tpu.memory_space<vmem>>, vector<16x1xi32>
    %c0_i32 = arith.constant 0 : i32
    %13 = vector.broadcast %c0_i32 : i32 to vector<16x1xi32>
    %14 = arith.cmpi eq, %12, %13 : vector<16x1xi32>
    %c0_10 = arith.constant 0 : index
    %c0_11 = arith.constant 0 : index
    %15 = vector.load %arg11[%c0_10, %c0_11] : memref<2x32xf32, #tpu.memory_space<vmem>>, vector<1x32xf32>
    %c1 = arith.constant 1 : index
    %c0_12 = arith.constant 0 : index
    %16 = vector.load %arg11[%c1, %c0_12] : memref<2x32xf32, #tpu.memory_space<vmem>>, vector<1x32xf32>
    %17 = vector.shape_cast %14 : vector<16x1xi1> to vector<16x1xi1>
    %18 = vector.broadcast %17 : vector<16x1xi1> to vector<16x32xi1>
    %19 = vector.shape_cast %15 : vector<1x32xf32> to vector<1x32xf32>
    %20 = vector.broadcast %19 : vector<1x32xf32> to vector<16x32xf32>
    %21 = vector.shape_cast %16 : vector<1x32xf32> to vector<1x32xf32>
    %22 = vector.broadcast %21 : vector<1x32xf32> to vector<16x32xf32>
    %23 = arith.select %18, %20, %22 : vector<16x32xi1>, vector<16x32xf32>
    %24 = arith.addf %11, %23 : vector<16x32xf32>
    %c0_13 = arith.constant 0 : index
    %c0_14 = arith.constant 0 : index
    %25 = vector.load %arg12[%c0_13, %c0_14] : memref<1x32xf32, #tpu.memory_space<vmem>>, vector<1x32xf32>
    %c0_15 = arith.constant 0 : index
    %c0_16 = arith.constant 0 : index
    %26 = vector.load %arg13[%c0_15, %c0_16] : memref<1x32xf32, #tpu.memory_space<vmem>>, vector<1x32xf32>
    %cst_17 = arith.constant dense<0.000000e+00> : vector<16xf32>
    %27 = vector.multi_reduction <add>, %24, %cst_17 [1] : vector<16x32xf32> to vector<16xf32>
    %28 = vector.shape_cast %27 : vector<16xf32> to vector<16x1xf32>
    %cst_18 = arith.constant 3.200000e+01 : f32
    %29 = vector.broadcast %cst_18 : f32 to vector<16x1xf32>
    %30 = arith.divf %28, %29 : vector<16x1xf32>
    %31 = vector.broadcast %30 : vector<16x1xf32> to vector<16x32xf32>
    %32 = arith.subf %24, %31 : vector<16x32xf32>
    %33 = arith.mulf %32, %32 : vector<16x32xf32>
    %cst_19 = arith.constant dense<0.000000e+00> : vector<16xf32>
    %34 = vector.multi_reduction <add>, %33, %cst_19 [1] : vector<16x32xf32> to vector<16xf32>
    %35 = vector.shape_cast %34 : vector<16xf32> to vector<16x1xf32>
    %cst_20 = arith.constant 3.200000e+01 : f32
    %36 = vector.broadcast %cst_20 : f32 to vector<16x1xf32>
    %37 = arith.divf %35, %36 : vector<16x1xf32>
    %cst_21 = arith.constant 9.99999996E-13 : f32
    %38 = vector.broadcast %cst_21 : f32 to vector<16x1xf32>
    %39 = arith.addf %37, %38 : vector<16x1xf32>
    %40 = math.rsqrt %39 : vector<16x1xf32>
    %41 = vector.broadcast %30 : vector<16x1xf32> to vector<16x32xf32>
    %42 = arith.subf %24, %41 : vector<16x32xf32>
    %43 = vector.broadcast %40 : vector<16x1xf32> to vector<16x32xf32>
    %44 = arith.mulf %42, %43 : vector<16x32xf32>
    %45 = vector.broadcast %25 : vector<1x32xf32> to vector<16x32xf32>
    %46 = arith.mulf %44, %45 : vector<16x32xf32>
    %47 = vector.broadcast %26 : vector<1x32xf32> to vector<16x32xf32>
    %48 = arith.addf %46, %47 : vector<16x32xf32>
    %c0_22 = arith.constant 0 : index
    %c0_23 = arith.constant 0 : index
    %49 = vector.load %arg3[%c0_22, %c0_23] : memref<64x16xf32, #tpu.memory_space<vmem>>, vector<64x16xf32>
    %c0_24 = arith.constant 0 : index
    %c0_25 = arith.constant 0 : index
    %50 = vector.load %arg4[%c0_24, %c0_25] : memref<64x32xf32, #tpu.memory_space<vmem>>, vector<64x32xf32>
    %c0_26 = arith.constant 0 : index
    %c0_27 = arith.constant 0 : index
    %51 = vector.load %arg5[%c0_26, %c0_27] : memref<64x64xf32, #tpu.memory_space<vmem>>, vector<64x64xf32>
    %c0_28 = arith.constant 0 : index
    %c0_29 = arith.constant 0 : index
    %52 = vector.load %arg6[%c0_28, %c0_29] : memref<16x64xf32, #tpu.memory_space<vmem>>, vector<16x64xf32>
    %c0_30 = arith.constant 0 : index
    %c0_31 = arith.constant 0 : index
    %53 = vector.load %arg2[%c0_30, %c0_31] : memref<1x16xf32, #tpu.memory_space<vmem>>, vector<1x16xf32>
    %cst_32 = arith.constant dense<0.000000e+00> : vector<1x64xf32>
    %54 = tpu.matmul %53, %49, %cst_32 {dimension_numbers = #tpu.dot_dimension_numbers<[1], [1], [0], [0], [0, 0, 1, 0], [], []>} : vector<1x16xf32>, vector<64x16xf32>, vector<1x64xf32> -> vector<1x64xf32>
    %cst_33 = arith.constant 1.000000e+00 : f32
    %55 = vector.broadcast %cst_33 : f32 to vector<16x64xf32>
    %56 = arith.subf %55, %52 : vector<16x64xf32>
    %57 = vector.broadcast %54 : vector<1x64xf32> to vector<16x64xf32>
    %58 = arith.mulf %56, %57 : vector<16x64xf32>
    %cst_34 = arith.constant 5.000000e-01 : f32
    %59 = vector.broadcast %cst_34 : f32 to vector<16x64xf32>
    %60 = arith.cmpf ogt, %58, %59 : vector<16x64xf32>
    %cst_35 = arith.constant 0.000000e+00 : f32
    %cst_36 = arith.constant -1.000000e+09 : f32
    %61 = vector.broadcast %cst_35 : f32 to vector<16x64xf32>
    %62 = vector.broadcast %cst_36 : f32 to vector<16x64xf32>
    %63 = arith.select %60, %61, %62 : vector<16x64xi1>, vector<16x64xf32>
    %c0_37 = arith.constant 0 : index
    %c0_38 = arith.constant 0 : index
    %c0_39 = arith.constant 0 : index
    %64 = vector.load %arg14[%c0_37, %c0_38, %c0_39] : memref<2x32x96xf32, #tpu.memory_space<vmem>>, vector<1x32x96xf32>
    %65 = vector.shape_cast %64 : vector<1x32x96xf32> to vector<32x96xf32>
    %cst_40 = arith.constant dense<0.000000e+00> : vector<16x96xf32>
    %66 = tpu.matmul %48, %65, %cst_40 {dimension_numbers = #tpu.dot_dimension_numbers<[1], [0], [0], [1], [0, 0, 1, 1], [], []>} : vector<16x32xf32>, vector<32x96xf32>, vector<16x96xf32> -> vector<16x96xf32>
    %c0_41 = arith.constant 0 : index
    %c0_42 = arith.constant 0 : index
    %c0_43 = arith.constant 0 : index
    %67 = vector.load %arg15[%c0_41, %c0_42, %c0_43] : memref<2x1x96xf32, #tpu.memory_space<vmem>>, vector<1x1x96xf32>
    %68 = vector.shape_cast %67 : vector<1x1x96xf32> to vector<1x96xf32>
    %69 = vector.broadcast %68 : vector<1x96xf32> to vector<16x96xf32>
    %70 = arith.addf %66, %69 : vector<16x96xf32>
    %71 = vector.extract_strided_slice %70 {offsets = [0, 0], sizes = [16, 32], strides = [1, 1]} : vector<16x96xf32> to vector<16x32xf32>
    %72 = vector.extract_strided_slice %70 {offsets = [0, 32], sizes = [16, 32], strides = [1, 1]} : vector<16x96xf32> to vector<16x32xf32>
    %cst_44 = arith.constant dense<0.000000e+00> : vector<64x32xf32>
    %73 = tpu.matmul %49, %72, %cst_44 {dimension_numbers = #tpu.dot_dimension_numbers<[1], [0], [0], [1], [0, 0, 1, 1], [], []>} : vector<64x16xf32>, vector<16x32xf32>, vector<64x32xf32> -> vector<64x32xf32>
    %74 = arith.mulf %73, %50 : vector<64x32xf32>
    %75 = vector.extract_strided_slice %70 {offsets = [0, 64], sizes = [16, 32], strides = [1, 1]} : vector<16x96xf32> to vector<16x32xf32>
    %cst_45 = arith.constant dense<0.000000e+00> : vector<64x32xf32>
    %76 = tpu.matmul %49, %75, %cst_45 {dimension_numbers = #tpu.dot_dimension_numbers<[1], [0], [0], [1], [0, 0, 1, 1], [], []>} : vector<64x16xf32>, vector<16x32xf32>, vector<64x32xf32> -> vector<64x32xf32>
    %77 = arith.mulf %76, %50 : vector<64x32xf32>
    %cst_46 = arith.constant dense<0.000000e+00> : vector<16x64xf32>
    %78 = tpu.matmul %71, %74, %cst_46 {dimension_numbers = #tpu.dot_dimension_numbers<[1], [1], [0], [0], [0, 0, 1, 0], [], []>} : vector<16x32xf32>, vector<64x32xf32>, vector<16x64xf32> -> vector<16x64xf32>
    %79 = arith.addf %78, %63 : vector<16x64xf32>
    %cst_47 = arith.constant dense<0xFF800000> : vector<16xf32>
    %80 = vector.multi_reduction <maximumf>, %79, %cst_47 [1] : vector<16x64xf32> to vector<16xf32>
    %81 = vector.shape_cast %80 : vector<16xf32> to vector<16x1xf32>
    %82 = vector.broadcast %81 : vector<16x1xf32> to vector<16x64xf32>
    %83 = arith.subf %79, %82 : vector<16x64xf32>
    %84 = math.exp %83 : vector<16x64xf32>
    %cst_48 = arith.constant dense<0.000000e+00> : vector<16x64xf32>
    %85 = tpu.matmul %84, %51, %cst_48 {dimension_numbers = #tpu.dot_dimension_numbers<[1], [0], [0], [1], [0, 0, 1, 1], [], []>} : vector<16x64xf32>, vector<64x64xf32>, vector<16x64xf32> -> vector<16x64xf32>
    %86 = arith.addf %85, %52 : vector<16x64xf32>
    %87 = tpu.reciprocal %86 {approx = true} : vector<16x64xf32> -> vector<16x64xf32>
    %88 = arith.mulf %84, %87 : vector<16x64xf32>
    %cst_49 = arith.constant dense<0.000000e+00> : vector<16x32xf32>
    %89 = tpu.matmul %88, %77, %cst_49 {dimension_numbers = #tpu.dot_dimension_numbers<[1], [0], [0], [1], [0, 0, 1, 1], [], []>} : vector<16x64xf32>, vector<64x32xf32>, vector<16x32xf32> -> vector<16x32xf32>
    %c0_50 = arith.constant 0 : index
    %c0_51 = arith.constant 0 : index
    %c0_52 = arith.constant 0 : index
    %90 = vector.load %arg16[%c0_50, %c0_51, %c0_52] : memref<2x32x32xf32, #tpu.memory_space<vmem>>, vector<1x32x32xf32>
    %91 = vector.shape_cast %90 : vector<1x32x32xf32> to vector<32x32xf32>
    %cst_53 = arith.constant dense<0.000000e+00> : vector<16x32xf32>
    %92 = tpu.matmul %89, %91, %cst_53 {dimension_numbers = #tpu.dot_dimension_numbers<[1], [0], [0], [1], [0, 0, 1, 1], [], []>} : vector<16x32xf32>, vector<32x32xf32>, vector<16x32xf32> -> vector<16x32xf32>
    %c0_54 = arith.constant 0 : index
    %c0_55 = arith.constant 0 : index
    %c0_56 = arith.constant 0 : index
    %93 = vector.load %arg17[%c0_54, %c0_55, %c0_56] : memref<2x1x32xf32, #tpu.memory_space<vmem>>, vector<1x1x32xf32>
    %94 = vector.shape_cast %93 : vector<1x1x32xf32> to vector<1x32xf32>
    %95 = vector.broadcast %94 : vector<1x32xf32> to vector<16x32xf32>
    %96 = arith.addf %92, %95 : vector<16x32xf32>
    %97 = arith.addf %96, %48 : vector<16x32xf32>
    %c0_57 = arith.constant 0 : index
    %c0_58 = arith.constant 0 : index
    %c0_59 = arith.constant 0 : index
    %98 = vector.load %arg18[%c0_57, %c0_58, %c0_59] : memref<2x1x32xf32, #tpu.memory_space<vmem>>, vector<1x1x32xf32>
    %99 = vector.shape_cast %98 : vector<1x1x32xf32> to vector<1x32xf32>
    %c0_60 = arith.constant 0 : index
    %c0_61 = arith.constant 0 : index
    %c0_62 = arith.constant 0 : index
    %100 = vector.load %arg19[%c0_60, %c0_61, %c0_62] : memref<2x1x32xf32, #tpu.memory_space<vmem>>, vector<1x1x32xf32>
    %101 = vector.shape_cast %100 : vector<1x1x32xf32> to vector<1x32xf32>
    %cst_63 = arith.constant dense<0.000000e+00> : vector<16xf32>
    %102 = vector.multi_reduction <add>, %97, %cst_63 [1] : vector<16x32xf32> to vector<16xf32>
    %103 = vector.shape_cast %102 : vector<16xf32> to vector<16x1xf32>
    %cst_64 = arith.constant 3.200000e+01 : f32
    %104 = vector.broadcast %cst_64 : f32 to vector<16x1xf32>
    %105 = arith.divf %103, %104 : vector<16x1xf32>
    %106 = vector.broadcast %105 : vector<16x1xf32> to vector<16x32xf32>
    %107 = arith.subf %97, %106 : vector<16x32xf32>
    %108 = arith.mulf %107, %107 : vector<16x32xf32>
    %cst_65 = arith.constant dense<0.000000e+00> : vector<16xf32>
    %109 = vector.multi_reduction <add>, %108, %cst_65 [1] : vector<16x32xf32> to vector<16xf32>
    %110 = vector.shape_cast %109 : vector<16xf32> to vector<16x1xf32>
    %cst_66 = arith.constant 3.200000e+01 : f32
    %111 = vector.broadcast %cst_66 : f32 to vector<16x1xf32>
    %112 = arith.divf %110, %111 : vector<16x1xf32>
    %cst_67 = arith.constant 9.99999996E-13 : f32
    %113 = vector.broadcast %cst_67 : f32 to vector<16x1xf32>
    %114 = arith.addf %112, %113 : vector<16x1xf32>
    %115 = math.rsqrt %114 : vector<16x1xf32>
    %116 = vector.broadcast %105 : vector<16x1xf32> to vector<16x32xf32>
    %117 = arith.subf %97, %116 : vector<16x32xf32>
    %118 = vector.broadcast %115 : vector<16x1xf32> to vector<16x32xf32>
    %119 = arith.mulf %117, %118 : vector<16x32xf32>
    %120 = vector.broadcast %99 : vector<1x32xf32> to vector<16x32xf32>
    %121 = arith.mulf %119, %120 : vector<16x32xf32>
    %122 = vector.broadcast %101 : vector<1x32xf32> to vector<16x32xf32>
    %123 = arith.addf %121, %122 : vector<16x32xf32>
    %c0_68 = arith.constant 0 : index
    %c0_69 = arith.constant 0 : index
    %c0_70 = arith.constant 0 : index
    %124 = vector.load %arg20[%c0_68, %c0_69, %c0_70] : memref<2x32x64xf32, #tpu.memory_space<vmem>>, vector<1x32x64xf32>
    %125 = vector.shape_cast %124 : vector<1x32x64xf32> to vector<32x64xf32>
    %cst_71 = arith.constant dense<0.000000e+00> : vector<16x64xf32>
    %126 = tpu.matmul %123, %125, %cst_71 {dimension_numbers = #tpu.dot_dimension_numbers<[1], [0], [0], [1], [0, 0, 1, 1], [], []>} : vector<16x32xf32>, vector<32x64xf32>, vector<16x64xf32> -> vector<16x64xf32>
    %c0_72 = arith.constant 0 : index
    %c0_73 = arith.constant 0 : index
    %c0_74 = arith.constant 0 : index
    %127 = vector.load %arg21[%c0_72, %c0_73, %c0_74] : memref<2x1x64xf32, #tpu.memory_space<vmem>>, vector<1x1x64xf32>
    %128 = vector.shape_cast %127 : vector<1x1x64xf32> to vector<1x64xf32>
    %129 = vector.broadcast %128 : vector<1x64xf32> to vector<16x64xf32>
    %130 = arith.addf %126, %129 : vector<16x64xf32>
    %cst_75 = arith.constant 5.000000e-01 : f32
    %131 = vector.broadcast %cst_75 : f32 to vector<16x64xf32>
    %132 = arith.mulf %131, %130 : vector<16x64xf32>
    %cst_76 = arith.constant 4.471500e-02 : f32
    %133 = vector.broadcast %cst_76 : f32 to vector<16x64xf32>
    %134 = arith.mulf %133, %130 : vector<16x64xf32>
    %135 = arith.mulf %134, %130 : vector<16x64xf32>
    %136 = arith.mulf %135, %130 : vector<16x64xf32>
    %137 = arith.addf %130, %136 : vector<16x64xf32>
    %cst_77 = arith.constant 0.797884583 : f32
    %138 = vector.broadcast %cst_77 : f32 to vector<16x64xf32>
    %139 = arith.mulf %138, %137 : vector<16x64xf32>
    %140 = math.tanh %139 : vector<16x64xf32>
    %cst_78 = arith.constant 1.000000e+00 : f32
    %141 = vector.broadcast %cst_78 : f32 to vector<16x64xf32>
    %142 = arith.addf %141, %140 : vector<16x64xf32>
    %143 = arith.mulf %132, %142 : vector<16x64xf32>
    %c0_79 = arith.constant 0 : index
    %c0_80 = arith.constant 0 : index
    %c0_81 = arith.constant 0 : index
    %144 = vector.load %arg22[%c0_79, %c0_80, %c0_81] : memref<2x64x32xf32, #tpu.memory_space<vmem>>, vector<1x64x32xf32>
    %145 = vector.shape_cast %144 : vector<1x64x32xf32> to vector<64x32xf32>
    %cst_82 = arith.constant dense<0.000000e+00> : vector<16x32xf32>
    %146 = tpu.matmul %143, %145, %cst_82 {dimension_numbers = #tpu.dot_dimension_numbers<[1], [0], [0], [1], [0, 0, 1, 1], [], []>} : vector<16x64xf32>, vector<64x32xf32>, vector<16x32xf32> -> vector<16x32xf32>
    %c0_83 = arith.constant 0 : index
    %c0_84 = arith.constant 0 : index
    %c0_85 = arith.constant 0 : index
    %147 = vector.load %arg23[%c0_83, %c0_84, %c0_85] : memref<2x1x32xf32, #tpu.memory_space<vmem>>, vector<1x1x32xf32>
    %148 = vector.shape_cast %147 : vector<1x1x32xf32> to vector<1x32xf32>
    %149 = vector.broadcast %148 : vector<1x32xf32> to vector<16x32xf32>
    %150 = arith.addf %146, %149 : vector<16x32xf32>
    %151 = arith.addf %150, %123 : vector<16x32xf32>
    %c0_86 = arith.constant 0 : index
    %c0_87 = arith.constant 0 : index
    %c0_88 = arith.constant 0 : index
    %152 = vector.load %arg24[%c0_86, %c0_87, %c0_88] : memref<2x1x32xf32, #tpu.memory_space<vmem>>, vector<1x1x32xf32>
    %153 = vector.shape_cast %152 : vector<1x1x32xf32> to vector<1x32xf32>
    %c0_89 = arith.constant 0 : index
    %c0_90 = arith.constant 0 : index
    %c0_91 = arith.constant 0 : index
    %154 = vector.load %arg25[%c0_89, %c0_90, %c0_91] : memref<2x1x32xf32, #tpu.memory_space<vmem>>, vector<1x1x32xf32>
    %155 = vector.shape_cast %154 : vector<1x1x32xf32> to vector<1x32xf32>
    %cst_92 = arith.constant dense<0.000000e+00> : vector<16xf32>
    %156 = vector.multi_reduction <add>, %151, %cst_92 [1] : vector<16x32xf32> to vector<16xf32>
    %157 = vector.shape_cast %156 : vector<16xf32> to vector<16x1xf32>
    %cst_93 = arith.constant 3.200000e+01 : f32
    %158 = vector.broadcast %cst_93 : f32 to vector<16x1xf32>
    %159 = arith.divf %157, %158 : vector<16x1xf32>
    %160 = vector.broadcast %159 : vector<16x1xf32> to vector<16x32xf32>
    %161 = arith.subf %151, %160 : vector<16x32xf32>
    %162 = arith.mulf %161, %161 : vector<16x32xf32>
    %cst_94 = arith.constant dense<0.000000e+00> : vector<16xf32>
    %163 = vector.multi_reduction <add>, %162, %cst_94 [1] : vector<16x32xf32> to vector<16xf32>
    %164 = vector.shape_cast %163 : vector<16xf32> to vector<16x1xf32>
    %cst_95 = arith.constant 3.200000e+01 : f32
    %165 = vector.broadcast %cst_95 : f32 to vector<16x1xf32>
    %166 = arith.divf %164, %165 : vector<16x1xf32>
    %cst_96 = arith.constant 9.99999996E-13 : f32
    %167 = vector.broadcast %cst_96 : f32 to vector<16x1xf32>
    %168 = arith.addf %166, %167 : vector<16x1xf32>
    %169 = math.rsqrt %168 : vector<16x1xf32>
    %170 = vector.broadcast %159 : vector<16x1xf32> to vector<16x32xf32>
    %171 = arith.subf %151, %170 : vector<16x32xf32>
    %172 = vector.broadcast %169 : vector<16x1xf32> to vector<16x32xf32>
    %173 = arith.mulf %171, %172 : vector<16x32xf32>
    %174 = vector.broadcast %153 : vector<1x32xf32> to vector<16x32xf32>
    %175 = arith.mulf %173, %174 : vector<16x32xf32>
    %176 = vector.broadcast %155 : vector<1x32xf32> to vector<16x32xf32>
    %177 = arith.addf %175, %176 : vector<16x32xf32>
    %c1_97 = arith.constant 1 : index
    %c0_98 = arith.constant 0 : index
    %c0_99 = arith.constant 0 : index
    %178 = vector.load %arg14[%c1_97, %c0_98, %c0_99] : memref<2x32x96xf32, #tpu.memory_space<vmem>>, vector<1x32x96xf32>
    %179 = vector.shape_cast %178 : vector<1x32x96xf32> to vector<32x96xf32>
    %cst_100 = arith.constant dense<0.000000e+00> : vector<16x96xf32>
    %180 = tpu.matmul %177, %179, %cst_100 {dimension_numbers = #tpu.dot_dimension_numbers<[1], [0], [0], [1], [0, 0, 1, 1], [], []>} : vector<16x32xf32>, vector<32x96xf32>, vector<16x96xf32> -> vector<16x96xf32>
    %c1_101 = arith.constant 1 : index
    %c0_102 = arith.constant 0 : index
    %c0_103 = arith.constant 0 : index
    %181 = vector.load %arg15[%c1_101, %c0_102, %c0_103] : memref<2x1x96xf32, #tpu.memory_space<vmem>>, vector<1x1x96xf32>
    %182 = vector.shape_cast %181 : vector<1x1x96xf32> to vector<1x96xf32>
    %183 = vector.broadcast %182 : vector<1x96xf32> to vector<16x96xf32>
    %184 = arith.addf %180, %183 : vector<16x96xf32>
    %185 = vector.extract_strided_slice %184 {offsets = [0, 0], sizes = [16, 32], strides = [1, 1]} : vector<16x96xf32> to vector<16x32xf32>
    %186 = vector.extract_strided_slice %184 {offsets = [0, 32], sizes = [16, 32], strides = [1, 1]} : vector<16x96xf32> to vector<16x32xf32>
    %cst_104 = arith.constant dense<0.000000e+00> : vector<64x32xf32>
    %187 = tpu.matmul %49, %186, %cst_104 {dimension_numbers = #tpu.dot_dimension_numbers<[1], [0], [0], [1], [0, 0, 1, 1], [], []>} : vector<64x16xf32>, vector<16x32xf32>, vector<64x32xf32> -> vector<64x32xf32>
    %188 = arith.mulf %187, %50 : vector<64x32xf32>
    %189 = vector.extract_strided_slice %184 {offsets = [0, 64], sizes = [16, 32], strides = [1, 1]} : vector<16x96xf32> to vector<16x32xf32>
    %cst_105 = arith.constant dense<0.000000e+00> : vector<64x32xf32>
    %190 = tpu.matmul %49, %189, %cst_105 {dimension_numbers = #tpu.dot_dimension_numbers<[1], [0], [0], [1], [0, 0, 1, 1], [], []>} : vector<64x16xf32>, vector<16x32xf32>, vector<64x32xf32> -> vector<64x32xf32>
    %191 = arith.mulf %190, %50 : vector<64x32xf32>
    %cst_106 = arith.constant dense<0.000000e+00> : vector<16x64xf32>
    %192 = tpu.matmul %185, %188, %cst_106 {dimension_numbers = #tpu.dot_dimension_numbers<[1], [1], [0], [0], [0, 0, 1, 0], [], []>} : vector<16x32xf32>, vector<64x32xf32>, vector<16x64xf32> -> vector<16x64xf32>
    %193 = arith.addf %192, %63 : vector<16x64xf32>
    %cst_107 = arith.constant dense<0xFF800000> : vector<16xf32>
    %194 = vector.multi_reduction <maximumf>, %193, %cst_107 [1] : vector<16x64xf32> to vector<16xf32>
    %195 = vector.shape_cast %194 : vector<16xf32> to vector<16x1xf32>
    %196 = vector.broadcast %195 : vector<16x1xf32> to vector<16x64xf32>
    %197 = arith.subf %193, %196 : vector<16x64xf32>
    %198 = math.exp %197 : vector<16x64xf32>
    %cst_108 = arith.constant dense<0.000000e+00> : vector<16x64xf32>
    %199 = tpu.matmul %198, %51, %cst_108 {dimension_numbers = #tpu.dot_dimension_numbers<[1], [0], [0], [1], [0, 0, 1, 1], [], []>} : vector<16x64xf32>, vector<64x64xf32>, vector<16x64xf32> -> vector<16x64xf32>
    %200 = arith.addf %199, %52 : vector<16x64xf32>
    %201 = tpu.reciprocal %200 {approx = true} : vector<16x64xf32> -> vector<16x64xf32>
    %202 = arith.mulf %198, %201 : vector<16x64xf32>
    %cst_109 = arith.constant dense<0.000000e+00> : vector<16x32xf32>
    %203 = tpu.matmul %202, %191, %cst_109 {dimension_numbers = #tpu.dot_dimension_numbers<[1], [0], [0], [1], [0, 0, 1, 1], [], []>} : vector<16x64xf32>, vector<64x32xf32>, vector<16x32xf32> -> vector<16x32xf32>
    %c1_110 = arith.constant 1 : index
    %c0_111 = arith.constant 0 : index
    %c0_112 = arith.constant 0 : index
    %204 = vector.load %arg16[%c1_110, %c0_111, %c0_112] : memref<2x32x32xf32, #tpu.memory_space<vmem>>, vector<1x32x32xf32>
    %205 = vector.shape_cast %204 : vector<1x32x32xf32> to vector<32x32xf32>
    %cst_113 = arith.constant dense<0.000000e+00> : vector<16x32xf32>
    %206 = tpu.matmul %203, %205, %cst_113 {dimension_numbers = #tpu.dot_dimension_numbers<[1], [0], [0], [1], [0, 0, 1, 1], [], []>} : vector<16x32xf32>, vector<32x32xf32>, vector<16x32xf32> -> vector<16x32xf32>
    %c1_114 = arith.constant 1 : index
    %c0_115 = arith.constant 0 : index
    %c0_116 = arith.constant 0 : index
    %207 = vector.load %arg17[%c1_114, %c0_115, %c0_116] : memref<2x1x32xf32, #tpu.memory_space<vmem>>, vector<1x1x32xf32>
    %208 = vector.shape_cast %207 : vector<1x1x32xf32> to vector<1x32xf32>
    %209 = vector.broadcast %208 : vector<1x32xf32> to vector<16x32xf32>
    %210 = arith.addf %206, %209 : vector<16x32xf32>
    %211 = arith.addf %210, %177 : vector<16x32xf32>
    %c1_117 = arith.constant 1 : index
    %c0_118 = arith.constant 0 : index
    %c0_119 = arith.constant 0 : index
    %212 = vector.load %arg18[%c1_117, %c0_118, %c0_119] : memref<2x1x32xf32, #tpu.memory_space<vmem>>, vector<1x1x32xf32>
    %213 = vector.shape_cast %212 : vector<1x1x32xf32> to vector<1x32xf32>
    %c1_120 = arith.constant 1 : index
    %c0_121 = arith.constant 0 : index
    %c0_122 = arith.constant 0 : index
    %214 = vector.load %arg19[%c1_120, %c0_121, %c0_122] : memref<2x1x32xf32, #tpu.memory_space<vmem>>, vector<1x1x32xf32>
    %215 = vector.shape_cast %214 : vector<1x1x32xf32> to vector<1x32xf32>
    %cst_123 = arith.constant dense<0.000000e+00> : vector<16xf32>
    %216 = vector.multi_reduction <add>, %211, %cst_123 [1] : vector<16x32xf32> to vector<16xf32>
    %217 = vector.shape_cast %216 : vector<16xf32> to vector<16x1xf32>
    %cst_124 = arith.constant 3.200000e+01 : f32
    %218 = vector.broadcast %cst_124 : f32 to vector<16x1xf32>
    %219 = arith.divf %217, %218 : vector<16x1xf32>
    %220 = vector.broadcast %219 : vector<16x1xf32> to vector<16x32xf32>
    %221 = arith.subf %211, %220 : vector<16x32xf32>
    %222 = arith.mulf %221, %221 : vector<16x32xf32>
    %cst_125 = arith.constant dense<0.000000e+00> : vector<16xf32>
    %223 = vector.multi_reduction <add>, %222, %cst_125 [1] : vector<16x32xf32> to vector<16xf32>
    %224 = vector.shape_cast %223 : vector<16xf32> to vector<16x1xf32>
    %cst_126 = arith.constant 3.200000e+01 : f32
    %225 = vector.broadcast %cst_126 : f32 to vector<16x1xf32>
    %226 = arith.divf %224, %225 : vector<16x1xf32>
    %cst_127 = arith.constant 9.99999996E-13 : f32
    %227 = vector.broadcast %cst_127 : f32 to vector<16x1xf32>
    %228 = arith.addf %226, %227 : vector<16x1xf32>
    %229 = math.rsqrt %228 : vector<16x1xf32>
    %230 = vector.broadcast %219 : vector<16x1xf32> to vector<16x32xf32>
    %231 = arith.subf %211, %230 : vector<16x32xf32>
    %232 = vector.broadcast %229 : vector<16x1xf32> to vector<16x32xf32>
    %233 = arith.mulf %231, %232 : vector<16x32xf32>
    %234 = vector.broadcast %213 : vector<1x32xf32> to vector<16x32xf32>
    %235 = arith.mulf %233, %234 : vector<16x32xf32>
    %236 = vector.broadcast %215 : vector<1x32xf32> to vector<16x32xf32>
    %237 = arith.addf %235, %236 : vector<16x32xf32>
    %c1_128 = arith.constant 1 : index
    %c0_129 = arith.constant 0 : index
    %c0_130 = arith.constant 0 : index
    %238 = vector.load %arg20[%c1_128, %c0_129, %c0_130] : memref<2x32x64xf32, #tpu.memory_space<vmem>>, vector<1x32x64xf32>
    %239 = vector.shape_cast %238 : vector<1x32x64xf32> to vector<32x64xf32>
    %cst_131 = arith.constant dense<0.000000e+00> : vector<16x64xf32>
    %240 = tpu.matmul %237, %239, %cst_131 {dimension_numbers = #tpu.dot_dimension_numbers<[1], [0], [0], [1], [0, 0, 1, 1], [], []>} : vector<16x32xf32>, vector<32x64xf32>, vector<16x64xf32> -> vector<16x64xf32>
    %c1_132 = arith.constant 1 : index
    %c0_133 = arith.constant 0 : index
    %c0_134 = arith.constant 0 : index
    %241 = vector.load %arg21[%c1_132, %c0_133, %c0_134] : memref<2x1x64xf32, #tpu.memory_space<vmem>>, vector<1x1x64xf32>
    %242 = vector.shape_cast %241 : vector<1x1x64xf32> to vector<1x64xf32>
    %243 = vector.broadcast %242 : vector<1x64xf32> to vector<16x64xf32>
    %244 = arith.addf %240, %243 : vector<16x64xf32>
    %cst_135 = arith.constant 5.000000e-01 : f32
    %245 = vector.broadcast %cst_135 : f32 to vector<16x64xf32>
    %246 = arith.mulf %245, %244 : vector<16x64xf32>
    %cst_136 = arith.constant 4.471500e-02 : f32
    %247 = vector.broadcast %cst_136 : f32 to vector<16x64xf32>
    %248 = arith.mulf %247, %244 : vector<16x64xf32>
    %249 = arith.mulf %248, %244 : vector<16x64xf32>
    %250 = arith.mulf %249, %244 : vector<16x64xf32>
    %251 = arith.addf %244, %250 : vector<16x64xf32>
    %cst_137 = arith.constant 0.797884583 : f32
    %252 = vector.broadcast %cst_137 : f32 to vector<16x64xf32>
    %253 = arith.mulf %252, %251 : vector<16x64xf32>
    %254 = math.tanh %253 : vector<16x64xf32>
    %cst_138 = arith.constant 1.000000e+00 : f32
    %255 = vector.broadcast %cst_138 : f32 to vector<16x64xf32>
    %256 = arith.addf %255, %254 : vector<16x64xf32>
    %257 = arith.mulf %246, %256 : vector<16x64xf32>
    %c1_139 = arith.constant 1 : index
    %c0_140 = arith.constant 0 : index
    %c0_141 = arith.constant 0 : index
    %258 = vector.load %arg22[%c1_139, %c0_140, %c0_141] : memref<2x64x32xf32, #tpu.memory_space<vmem>>, vector<1x64x32xf32>
    %259 = vector.shape_cast %258 : vector<1x64x32xf32> to vector<64x32xf32>
    %cst_142 = arith.constant dense<0.000000e+00> : vector<16x32xf32>
    %260 = tpu.matmul %257, %259, %cst_142 {dimension_numbers = #tpu.dot_dimension_numbers<[1], [0], [0], [1], [0, 0, 1, 1], [], []>} : vector<16x64xf32>, vector<64x32xf32>, vector<16x32xf32> -> vector<16x32xf32>
    %c1_143 = arith.constant 1 : index
    %c0_144 = arith.constant 0 : index
    %c0_145 = arith.constant 0 : index
    %261 = vector.load %arg23[%c1_143, %c0_144, %c0_145] : memref<2x1x32xf32, #tpu.memory_space<vmem>>, vector<1x1x32xf32>
    %262 = vector.shape_cast %261 : vector<1x1x32xf32> to vector<1x32xf32>
    %263 = vector.broadcast %262 : vector<1x32xf32> to vector<16x32xf32>
    %264 = arith.addf %260, %263 : vector<16x32xf32>
    %265 = arith.addf %264, %237 : vector<16x32xf32>
    %c1_146 = arith.constant 1 : index
    %c0_147 = arith.constant 0 : index
    %c0_148 = arith.constant 0 : index
    %266 = vector.load %arg24[%c1_146, %c0_147, %c0_148] : memref<2x1x32xf32, #tpu.memory_space<vmem>>, vector<1x1x32xf32>
    %267 = vector.shape_cast %266 : vector<1x1x32xf32> to vector<1x32xf32>
    %c1_149 = arith.constant 1 : index
    %c0_150 = arith.constant 0 : index
    %c0_151 = arith.constant 0 : index
    %268 = vector.load %arg25[%c1_149, %c0_150, %c0_151] : memref<2x1x32xf32, #tpu.memory_space<vmem>>, vector<1x1x32xf32>
    %269 = vector.shape_cast %268 : vector<1x1x32xf32> to vector<1x32xf32>
    %cst_152 = arith.constant dense<0.000000e+00> : vector<16xf32>
    %270 = vector.multi_reduction <add>, %265, %cst_152 [1] : vector<16x32xf32> to vector<16xf32>
    %271 = vector.shape_cast %270 : vector<16xf32> to vector<16x1xf32>
    %cst_153 = arith.constant 3.200000e+01 : f32
    %272 = vector.broadcast %cst_153 : f32 to vector<16x1xf32>
    %273 = arith.divf %271, %272 : vector<16x1xf32>
    %274 = vector.broadcast %273 : vector<16x1xf32> to vector<16x32xf32>
    %275 = arith.subf %265, %274 : vector<16x32xf32>
    %276 = arith.mulf %275, %275 : vector<16x32xf32>
    %cst_154 = arith.constant dense<0.000000e+00> : vector<16xf32>
    %277 = vector.multi_reduction <add>, %276, %cst_154 [1] : vector<16x32xf32> to vector<16xf32>
    %278 = vector.shape_cast %277 : vector<16xf32> to vector<16x1xf32>
    %cst_155 = arith.constant 3.200000e+01 : f32
    %279 = vector.broadcast %cst_155 : f32 to vector<16x1xf32>
    %280 = arith.divf %278, %279 : vector<16x1xf32>
    %cst_156 = arith.constant 9.99999996E-13 : f32
    %281 = vector.broadcast %cst_156 : f32 to vector<16x1xf32>
    %282 = arith.addf %280, %281 : vector<16x1xf32>
    %283 = math.rsqrt %282 : vector<16x1xf32>
    %284 = vector.broadcast %273 : vector<16x1xf32> to vector<16x32xf32>
    %285 = arith.subf %265, %284 : vector<16x32xf32>
    %286 = vector.broadcast %283 : vector<16x1xf32> to vector<16x32xf32>
    %287 = arith.mulf %285, %286 : vector<16x32xf32>
    %288 = vector.broadcast %267 : vector<1x32xf32> to vector<16x32xf32>
    %289 = arith.mulf %287, %288 : vector<16x32xf32>
    %290 = vector.broadcast %269 : vector<1x32xf32> to vector<16x32xf32>
    %291 = arith.addf %289, %290 : vector<16x32xf32>
    %c0_157 = arith.constant 0 : index
    %c0_158 = arith.constant 0 : index
    %292 = vector.load %arg8[%c0_157, %c0_158] : memref<2x16xf32, #tpu.memory_space<vmem>>, vector<2x16xf32>
    %cst_159 = arith.constant dense<0.000000e+00> : vector<2x32xf32>
    %293 = tpu.matmul %292, %291, %cst_159 {dimension_numbers = #tpu.dot_dimension_numbers<[1], [0], [0], [1], [0, 0, 1, 1], [], []>} : vector<2x16xf32>, vector<16x32xf32>, vector<2x32xf32> -> vector<2x32xf32>
    %c0_160 = arith.constant 0 : index
    %c0_161 = arith.constant 0 : index
    %294 = vector.load %arg26[%c0_160, %c0_161] : memref<32x32xf32, #tpu.memory_space<vmem>>, vector<32x32xf32>
    %cst_162 = arith.constant dense<0.000000e+00> : vector<2x32xf32>
    %295 = tpu.matmul %293, %294, %cst_162 {dimension_numbers = #tpu.dot_dimension_numbers<[1], [0], [0], [1], [0, 0, 1, 1], [], []>} : vector<2x32xf32>, vector<32x32xf32>, vector<2x32xf32> -> vector<2x32xf32>
    %c0_163 = arith.constant 0 : index
    %c0_164 = arith.constant 0 : index
    %296 = vector.load %arg27[%c0_163, %c0_164] : memref<1x32xf32, #tpu.memory_space<vmem>>, vector<1x32xf32>
    %297 = vector.broadcast %296 : vector<1x32xf32> to vector<2x32xf32>
    %298 = arith.addf %295, %297 : vector<2x32xf32>
    %299 = math.tanh %298 : vector<2x32xf32>
    %c0_165 = arith.constant 0 : index
    %c0_166 = arith.constant 0 : index
    %300 = vector.load %arg28[%c0_165, %c0_166] : memref<32x1xf32, #tpu.memory_space<vmem>>, vector<32x1xf32>
    %cst_167 = arith.constant dense<0.000000e+00> : vector<2x1xf32>
    %301 = tpu.matmul %299, %300, %cst_167 {dimension_numbers = #tpu.dot_dimension_numbers<[1], [0], [0], [1], [0, 0, 1, 1], [], []>} : vector<2x32xf32>, vector<32x1xf32>, vector<2x1xf32> -> vector<2x1xf32>
    %c0_168 = arith.constant 0 : index
    %c0_169 = arith.constant 0 : index
    %302 = vector.load %arg29[%c0_168, %c0_169] : memref<1x1xf32, #tpu.memory_space<vmem>>, vector<1x1xf32>
    %303 = vector.broadcast %302 : vector<1x1xf32> to vector<2x1xf32>
    %304 = arith.addf %301, %303 : vector<2x1xf32>
    %c0_170 = arith.constant 0 : index
    %c0_171 = arith.constant 0 : index
    %305 = vector.load %arg30[%c0_170, %c0_171] : memref<2x1xf32, #tpu.memory_space<vmem>>, vector<2x1xf32>
    tpu.vector_store %arg30[%c0_170, %c0_171], %304 {strides = array<i32>} : memref<2x1xf32, #tpu.memory_space<vmem>>, vector<2x1xf32>,
    return
  }
}

</mosaic_0001>

<llo_original>
// kernel: bert_for_regression.1
$region0: #{bert_for_regression.1}
  #allocation0 [shape = 'u32[]', space=smem, size = 0x4, offset = 0x4, fixed_abs, tag = 'smem constant byte address 0x4 - core index']
  #allocation1 [shape = 'u32[72,128]{1,0:T(1,128)}', space=vmem, size = 0x9000, scoped, tag = 'internal scratch']
  #allocation2 [shape = 'f32[1,1]{1,0:T(1,128)S(1)}', space=vmem, size = 0x200, scoped, tag = 'scoped memory for bert_for_regression.1']
  %s0 = inlined_call_operand.smem [shape: u32[31], index: -1, kind: input, shape index: {}]
  %s1 = sld [smem:[%s0]]
  %s2 = scalar_lea.smem %s0, 1
  %s3 = sld [smem:[%s2]]
  %s4 = scalar_lea.smem %s0, 2
  %s5 = sld [smem:[%s4]]
  %s6 = scalar_lea.smem %s0, 3
  %s7 = sld [smem:[%s6]]
  %s8 = scalar_lea.smem %s0, 4
  %s9 = sld [smem:[%s8]]
  %s10 = scalar_lea.smem %s0, 5
  %s11 = sld [smem:[%s10]]
  %s12 = scalar_lea.smem %s0, 6
  %s13 = sld [smem:[%s12]]
  %s14 = scalar_lea.smem %s0, 7
  %s15 = sld [smem:[%s14]]
  %s16 = scalar_lea.smem %s0, 8
  %s17 = sld [smem:[%s16]]
  %s18 = scalar_lea.smem %s0, 9
  %s19 = sld [smem:[%s18]]
  %s20 = scalar_lea.smem %s0, 10
  %s21 = sld [smem:[%s20]]
  %s22 = scalar_lea.smem %s0, 11
  %s23 = sld [smem:[%s22]]
  %s24 = scalar_lea.smem %s0, 12
  %s25 = sld [smem:[%s24]]
  %s26 = scalar_lea.smem %s0, 13
  %s27 = sld [smem:[%s26]]
  %s28 = scalar_lea.smem %s0, 14
  %s29 = sld [smem:[%s28]]
  %s30 = scalar_lea.smem %s0, 15
  %s31 = sld [smem:[%s30]]
  %s32 = scalar_lea.smem %s0, 16
  %s33 = sld [smem:[%s32]]
  %s34 = scalar_lea.smem %s0, 17
  %s35 = sld [smem:[%s34]]
  %s36 = scalar_lea.smem %s0, 18
  %s37 = sld [smem:[%s36]]
  %s38 = scalar_lea.smem %s0, 19
  %s39 = sld [smem:[%s38]]
  %s40 = scalar_lea.smem %s0, 20
  %s41 = sld [smem:[%s40]]
  %s42 = scalar_lea.smem %s0, 21
  %s43 = sld [smem:[%s42]]
  %s44 = scalar_lea.smem %s0, 22
  %s45 = sld [smem:[%s44]]
  %s46 = scalar_lea.smem %s0, 23
  %s47 = sld [smem:[%s46]]
  %s48 = scalar_lea.smem %s0, 24
  %s49 = sld [smem:[%s48]]
  %s50 = scalar_lea.smem %s0, 25
  %s51 = sld [smem:[%s50]]
  %s52 = scalar_lea.smem %s0, 26
  %s53 = sld [smem:[%s52]]
  %s54 = scalar_lea.smem %s0, 27
  %s55 = sld [smem:[%s54]]
  %s56 = scalar_lea.smem %s0, 28
  %s57 = sld [smem:[%s56]]
  %s58 = scalar_lea.smem %s0, 29
  %s59 = sld [smem:[%s58]]
  %s60 = scalar_lea.smem %s0, 30
  %s61 = sld [smem:[%s60]]
  %s62 = sld [smem:[#allocation0]]
  $region190: #{bert_for_regression.1} parent=0
    _
  %s64 = ssub.s32 1, %s62
  %s65 = scalar_select 0, %s64, %s62
  %v66 = vstv %s59
  %67 = vst [vmem:[#allocation2] sm:$0x1] %v66
  $region1: #{bert_for_regression.1} parent=0
    #allocation3 [shape = 'u8[32768]{0}', space=vmem, size = 0x8000, scoped, tag = 'input window, operand 3, single buffered']
    #allocation4 [shape = 's32[1]{0}', space=sflag, size = 0x4, scoped, tag = 'scoped memory for bert_for_regression.1']
    #allocation5 [shape = 'u8[8192]{0}', space=vmem, size = 0x2000, scoped, tag = 'input window, operand 6, single buffered']
    #allocation6 [shape = 's32[1]{0}', space=sflag, size = 0x4, scoped, tag = 'scoped memory for bert_for_regression.1']
    #allocation7 [shape = 'u8[1024]{0}', space=vmem, size = 0x400, scoped, tag = 'input window, operand 8, single buffered']
    #allocation8 [shape = 'u8[512]{0}', space=vmem, size = 0x400, scoped, tag = 'input window, operand 12, single buffered']
    #allocation9 [shape = 's32[1]{0}', space=sflag, size = 0x4, scoped, tag = 'scoped memory for bert_for_regression.1']
    #allocation10 [shape = 'u8[512]{0}', space=vmem, size = 0x400, scoped, tag = 'input window, operand 13, single buffered']
    #allocation11 [shape = 'u8[1024]{0}', space=vmem, size = 0x400, scoped, tag = 'input window, operand 15, single buffered']
    #allocation12 [shape = 's32[1]{0}', space=sflag, size = 0x4, scoped, tag = 'scoped memory for bert_for_regression.1']
    #allocation13 [shape = 'u8[1024]{0}', space=vmem, size = 0x400, scoped, tag = 'input window, operand 17, single buffered']
    #allocation14 [shape = 'u8[1024]{0}', space=vmem, size = 0x400, scoped, tag = 'input window, operand 18, single buffered']
    #allocation15 [shape = 's32[1]{0}', space=sflag, size = 0x4, scoped, tag = 'scoped memory for bert_for_regression.1']
    #allocation16 [shape = 'u8[1024]{0}', space=vmem, size = 0x400, scoped, tag = 'input window, operand 19, single buffered']
    #allocation17 [shape = 'u8[1024]{0}', space=vmem, size = 0x400, scoped, tag = 'input window, operand 21, single buffered']
    #allocation18 [shape = 's32[1]{0}', space=sflag, size = 0x4, scoped, tag = 'scoped memory for bert_for_regression.1']
    #allocation19 [shape = 'u8[1024]{0}', space=vmem, size = 0x400, scoped, tag = 'input window, operand 23, single buffered']
    #allocation20 [shape = 'u8[1024]{0}', space=vmem, size = 0x400, scoped, tag = 'input window, operand 24, single buffered']
    #allocation21 [shape = 's32[1]{0}', space=sflag, size = 0x4, scoped, tag = 'scoped memory for bert_for_regression.1']
    #allocation22 [shape = 'u8[1024]{0}', space=vmem, size = 0x400, scoped, tag = 'input window, operand 25, single buffered']
    #allocation23 [shape = 'u8[16384]{0}', space=vmem, size = 0x4000, scoped, tag = 'input window, operand 26, single buffered']
    #allocation24 [shape = 's32[1]{0}', space=sflag, size = 0x4, scoped, tag = 'scoped memory for bert_for_regression.1']
    #allocation25 [shape = 'u8[512]{0}', space=vmem, size = 0x400, scoped, tag = 'input window, operand 27, single buffered']
    %68 = vsyncpa [#allocation4], 0
    %69 = vsyncpa [#allocation6], 0
    %70 = vsyncpa [#allocation9], 0
    %71 = vsyncpa [#allocation12], 0
    %72 = vsyncpa [#allocation15], 0
    %73 = vsyncpa [#allocation18], 0
    %74 = vsyncpa [#allocation21], 0
    %75 = vsyncpa [#allocation24], 0
    // Predicated region
    $region2: #{bert_for_regression.1} parent=1 // pred_check
      _
    $region3: #{bert_for_regression.1} parent=1 // pred_check_branch
      %77 = sbr.rel (0) target = $region5
    $region4: #{bert_for_regression.1} parent=1 // pred_region
      _
    $region5: #{bert_for_regression.1} parent=1 // pred_fallthru
      _
    // Predicated region
    $region6: #{bert_for_regression.1} parent=1 // pred_check
      _
    $region7: #{bert_for_regression.1} parent=1 // pred_check_branch
      %79 = sbr.rel (0) target = $region9
    $region8: #{bert_for_regression.1} parent=1 // pred_region
      _
    $region9: #{bert_for_regression.1} parent=1 // pred_fallthru
      _
    // Predicated region
    $region10: #{bert_for_regression.1} parent=1 // pred_check
      _
    $region11: #{bert_for_regression.1} parent=1 // pred_check_branch
      %81 = sbr.rel (0) target = $region13
    $region12: #{bert_for_regression.1} parent=1 // pred_region
      _
    $region13: #{bert_for_regression.1} parent=1 // pred_fallthru
      _
    // Predicated region
    $region14: #{bert_for_regression.1} parent=1 // pred_check
      _
    $region15: #{bert_for_regression.1} parent=1 // pred_check_branch
      %83 = sbr.rel (0) target = $region17
    $region16: #{bert_for_regression.1} parent=1 // pred_region
      %85 = vsyncadd [#allocation4], 0
      %s86 = sshll.u32 %s7, 4
      %s87 = int_to_ptr.hbm [resolvable:$true] %s86
      %s88 = sshll.u32 [#allocation3], 4
      %s89 = int_to_ptr.vmem [resolvable:$true] %s88
      %94 = dma.hbm_to_vmem [thread:$0]  %s87, 1024, %s89, [#allocation4], 128, 128, 8
    $region17: #{bert_for_regression.1} parent=1 // pred_fallthru
      _
    // Predicated region
    $region18: #{bert_for_regression.1} parent=1 // pred_check
      _
    $region19: #{bert_for_regression.1} parent=1 // pred_check_branch
      %96 = sbr.rel (0) target = $region21
    $region20: #{bert_for_regression.1} parent=1 // pred_region
      _
    $region21: #{bert_for_regression.1} parent=1 // pred_fallthru
      _
    // Predicated region
    $region22: #{bert_for_regression.1} parent=1 // pred_check
      _
    $region23: #{bert_for_regression.1} parent=1 // pred_check_branch
      %98 = sbr.rel (0) target = $region25
    $region24: #{bert_for_regression.1} parent=1 // pred_region
      _
    $region25: #{bert_for_regression.1} parent=1 // pred_fallthru
      _
    // Predicated region
    $region26: #{bert_for_regression.1} parent=1 // pred_check
      _
    $region27: #{bert_for_regression.1} parent=1 // pred_check_branch
      %100 = sbr.rel (0) target = $region29
    $region28: #{bert_for_regression.1} parent=1 // pred_region
      %102 = vsyncadd [#allocation6], 0
      %s103 = sshll.u32 %s13, 4
      %s104 = int_to_ptr.hbm [resolvable:$true] %s103
      %s105 = sshll.u32 [#allocation5], 4
      %s106 = int_to_ptr.vmem [resolvable:$true] %s105
      %111 = dma.hbm_to_vmem [thread:$0]  %s104, 256, %s106, [#allocation6], 128, 128, 8
    $region29: #{bert_for_regression.1} parent=1 // pred_fallthru
      _
    // Predicated region
    $region30: #{bert_for_regression.1} parent=1 // pred_check
      _
    $region31: #{bert_for_regression.1} parent=1 // pred_check_branch
      %113 = sbr.rel (0) target = $region33
    $region32: #{bert_for_regression.1} parent=1 // pred_region
      _
    $region33: #{bert_for_regression.1} parent=1 // pred_fallthru
      _
    // Predicated region
    $region34: #{bert_for_regression.1} parent=1 // pred_check
      _
    $region35: #{bert_for_regression.1} parent=1 // pred_check_branch
      %115 = sbr.rel (0) target = $region37
    $region36: #{bert_for_regression.1} parent=1 // pred_region
      %117 = vsyncadd [#allocation6], 0
      %s119 = sshll.u32 %s17, 4
      %s120 = int_to_ptr.hbm [resolvable:$true] %s119
      %s121 = sshll.u32 [#allocation7], 4
      %s122 = int_to_ptr.vmem [resolvable:$true] %s121
      %124 = dma.hbm_to_vmem [thread:$0]  %s120, 32, %s122, [#allocation6]
    $region37: #{bert_for_regression.1} parent=1 // pred_fallthru
      _
    // Predicated region
    $region38: #{bert_for_regression.1} parent=1 // pred_check
      _
    $region39: #{bert_for_regression.1} parent=1 // pred_check_branch
      %126 = sbr.rel (0) target = $region41
    $region40: #{bert_for_regression.1} parent=1 // pred_region
      _
    $region41: #{bert_for_regression.1} parent=1 // pred_fallthru
      _
    // Predicated region
    $region42: #{bert_for_regression.1} parent=1 // pred_check
      _
    $region43: #{bert_for_regression.1} parent=1 // pred_check_branch
      %128 = sbr.rel (0) target = $region45
    $region44: #{bert_for_regression.1} parent=1 // pred_region
      _
    $region45: #{bert_for_regression.1} parent=1 // pred_fallthru
      _
    // Predicated region
    $region46: #{bert_for_regression.1} parent=1 // pred_check
      _
    $region47: #{bert_for_regression.1} parent=1 // pred_check_branch
      %130 = sbr.rel (0) target = $region49
    $region48: #{bert_for_regression.1} parent=1 // pred_region
      _
    $region49: #{bert_for_regression.1} parent=1 // pred_fallthru
      _
    // Predicated region
    $region50: #{bert_for_regression.1} parent=1 // pred_check
      _
    $region51: #{bert_for_regression.1} parent=1 // pred_check_branch
      %132 = sbr.rel (0) target = $region53
    $region52: #{bert_for_regression.1} parent=1 // pred_region
      %134 = vsyncadd [#allocation9], 0
      %s136 = sshll.u32 %s25, 4
      %s137 = int_to_ptr.hbm [resolvable:$true] %s136
      %s138 = sshll.u32 [#allocation8], 4
      %s139 = int_to_ptr.vmem [resolvable:$true] %s138
      %141 = dma.hbm_to_vmem [thread:$0]  %s137, 16, %s139, [#allocation9]
    $region53: #{bert_for_regression.1} parent=1 // pred_fallthru
      _
    // Predicated region
    $region54: #{bert_for_regression.1} parent=1 // pred_check
      _
    $region55: #{bert_for_regression.1} parent=1 // pred_check_branch
      %143 = sbr.rel (0) target = $region57
    $region56: #{bert_for_regression.1} parent=1 // pred_region
      %145 = vsyncadd [#allocation9], 0
      %s147 = sshll.u32 %s27, 4
      %s148 = int_to_ptr.hbm [resolvable:$true] %s147
      %s149 = sshll.u32 [#allocation10], 4
      %s150 = int_to_ptr.vmem [resolvable:$true] %s149
      %152 = dma.hbm_to_vmem [thread:$0]  %s148, 16, %s150, [#allocation9]
    $region57: #{bert_for_regression.1} parent=1 // pred_fallthru
      _
    // Predicated region
    $region58: #{bert_for_regression.1} parent=1 // pred_check
      _
    $region59: #{bert_for_regression.1} parent=1 // pred_check_branch
      %154 = sbr.rel (0) target = $region61
    $region60: #{bert_for_regression.1} parent=1 // pred_region
      _
    $region61: #{bert_for_regression.1} parent=1 // pred_fallthru
      _
    // Predicated region
    $region62: #{bert_for_regression.1} parent=1 // pred_check
      _
    $region63: #{bert_for_regression.1} parent=1 // pred_check_branch
      %156 = sbr.rel (0) target = $region65
    $region64: #{bert_for_regression.1} parent=1 // pred_region
      %158 = vsyncadd [#allocation12], 0
      %s159 = sshll.u32 %s31, 4
      %s160 = int_to_ptr.hbm [resolvable:$true] %s159
      %s161 = sshll.u32 [#allocation11], 4
      %s162 = int_to_ptr.vmem [resolvable:$true] %s161
      %167 = dma.hbm_to_vmem [thread:$0]  %s160, 32, %s162, [#allocation12], 16, 16, 1
    $region65: #{bert_for_regression.1} parent=1 // pred_fallthru
      _
    // Predicated region
    $region66: #{bert_for_regression.1} parent=1 // pred_check
      _
    $region67: #{bert_for_regression.1} parent=1 // pred_check_branch
      %169 = sbr.rel (0) target = $region69
    $region68: #{bert_for_regression.1} parent=1 // pred_region
      _
    $region69: #{bert_for_regression.1} parent=1 // pred_fallthru
      _
    // Predicated region
    $region70: #{bert_for_regression.1} parent=1 // pred_check
      _
    $region71: #{bert_for_regression.1} parent=1 // pred_check_branch
      %171 = sbr.rel (0) target = $region73
    $region72: #{bert_for_regression.1} parent=1 // pred_region
      %173 = vsyncadd [#allocation12], 0
      %s174 = sshll.u32 %s35, 4
      %s175 = int_to_ptr.hbm [resolvable:$true] %s174
      %s176 = sshll.u32 [#allocation13], 4
      %s177 = int_to_ptr.vmem [resolvable:$true] %s176
      %182 = dma.hbm_to_vmem [thread:$0]  %s175, 32, %s177, [#allocation12], 16, 16, 1
    $region73: #{bert_for_regression.1} parent=1 // pred_fallthru
      _
    // Predicated region
    $region74: #{bert_for_regression.1} parent=1 // pred_check
      _
    $region75: #{bert_for_regression.1} parent=1 // pred_check_branch
      %184 = sbr.rel (0) target = $region77
    $region76: #{bert_for_regression.1} parent=1 // pred_region
      %186 = vsyncadd [#allocation15], 0
      %s187 = sshll.u32 %s37, 4
      %s188 = int_to_ptr.hbm [resolvable:$true] %s187
      %s189 = sshll.u32 [#allocation14], 4
      %s190 = int_to_ptr.vmem [resolvable:$true] %s189
      %195 = dma.hbm_to_vmem [thread:$0]  %s188, 32, %s190, [#allocation15], 16, 16, 1
    $region77: #{bert_for_regression.1} parent=1 // pred_fallthru
      _
    // Predicated region
    $region78: #{bert_for_regression.1} parent=1 // pred_check
      _
    $region79: #{bert_for_regression.1} parent=1 // pred_check_branch
      %197 = sbr.rel (0) target = $region81
    $region80: #{bert_for_regression.1} parent=1 // pred_region
      %199 = vsyncadd [#allocation15], 0
      %s200 = sshll.u32 %s39, 4
      %s201 = int_to_ptr.hbm [resolvable:$true] %s200
      %s202 = sshll.u32 [#allocation16], 4
      %s203 = int_to_ptr.vmem [resolvable:$true] %s202
      %208 = dma.hbm_to_vmem [thread:$0]  %s201, 32, %s203, [#allocation15], 16, 16, 1
    $region81: #{bert_for_regression.1} parent=1 // pred_fallthru
      _
    // Predicated region
    $region82: #{bert_for_regression.1} parent=1 // pred_check
      _
    $region83: #{bert_for_regression.1} parent=1 // pred_check_branch
      %210 = sbr.rel (0) target = $region85
    $region84: #{bert_for_regression.1} parent=1 // pred_region
      _
    $region85: #{bert_for_regression.1} parent=1 // pred_fallthru
      _
    // Predicated region
    $region86: #{bert_for_regression.1} parent=1 // pred_check
      _
    $region87: #{bert_for_regression.1} parent=1 // pred_check_branch
      %212 = sbr.rel (0) target = $region89
    $region88: #{bert_for_regression.1} parent=1 // pred_region
      %214 = vsyncadd [#allocation18], 0
      %s215 = sshll.u32 %s43, 4
      %s216 = int_to_ptr.hbm [resolvable:$true] %s215
      %s217 = sshll.u32 [#allocation17], 4
      %s218 = int_to_ptr.vmem [resolvable:$true] %s217
      %223 = dma.hbm_to_vmem [thread:$0]  %s216, 32, %s218, [#allocation18], 16, 16, 1
    $region89: #{bert_for_regression.1} parent=1 // pred_fallthru
      _
    // Predicated region
    $region90: #{bert_for_regression.1} parent=1 // pred_check
      _
    $region91: #{bert_for_regression.1} parent=1 // pred_check_branch
      %225 = sbr.rel (0) target = $region93
    $region92: #{bert_for_regression.1} parent=1 // pred_region
      _
    $region93: #{bert_for_regression.1} parent=1 // pred_fallthru
      _
    // Predicated region
    $region94: #{bert_for_regression.1} parent=1 // pred_check
      _
    $region95: #{bert_for_regression.1} parent=1 // pred_check_branch
      %227 = sbr.rel (0) target = $region97
    $region96: #{bert_for_regression.1} parent=1 // pred_region
      %229 = vsyncadd [#allocation18], 0
      %s230 = sshll.u32 %s47, 4
      %s231 = int_to_ptr.hbm [resolvable:$true] %s230
      %s232 = sshll.u32 [#allocation19], 4
      %s233 = int_to_ptr.vmem [resolvable:$true] %s232
      %238 = dma.hbm_to_vmem [thread:$0]  %s231, 32, %s233, [#allocation18], 16, 16, 1
    $region97: #{bert_for_regression.1} parent=1 // pred_fallthru
      _
    // Predicated region
    $region98: #{bert_for_regression.1} parent=1 // pred_check
      _
    $region99: #{bert_for_regression.1} parent=1 // pred_check_branch
      %240 = sbr.rel (0) target = $region101
    $region100: #{bert_for_regression.1} parent=1 // pred_region
      %242 = vsyncadd [#allocation21], 0
      %s243 = sshll.u32 %s49, 4
      %s244 = int_to_ptr.hbm [resolvable:$true] %s243
      %s245 = sshll.u32 [#allocation20], 4
      %s246 = int_to_ptr.vmem [resolvable:$true] %s245
      %251 = dma.hbm_to_vmem [thread:$0]  %s244, 32, %s246, [#allocation21], 16, 16, 1
    $region101: #{bert_for_regression.1} parent=1 // pred_fallthru
      _
    // Predicated region
    $region102: #{bert_for_regression.1} parent=1 // pred_check
      _
    $region103: #{bert_for_regression.1} parent=1 // pred_check_branch
      %253 = sbr.rel (0) target = $region105
    $region104: #{bert_for_regression.1} parent=1 // pred_region
      %255 = vsyncadd [#allocation21], 0
      %s256 = sshll.u32 %s51, 4
      %s257 = int_to_ptr.hbm [resolvable:$true] %s256
      %s258 = sshll.u32 [#allocation22], 4
      %s259 = int_to_ptr.vmem [resolvable:$true] %s258
      %264 = dma.hbm_to_vmem [thread:$0]  %s257, 32, %s259, [#allocation21], 16, 16, 1
    $region105: #{bert_for_regression.1} parent=1 // pred_fallthru
      _
    // Predicated region
    $region106: #{bert_for_regression.1} parent=1 // pred_check
      _
    $region107: #{bert_for_regression.1} parent=1 // pred_check_branch
      %266 = sbr.rel (0) target = $region109
    $region108: #{bert_for_regression.1} parent=1 // pred_region
      %268 = vsyncadd [#allocation24], 0
      %s269 = sshll.u32 %s53, 4
      %s270 = int_to_ptr.hbm [resolvable:$true] %s269
      %s271 = sshll.u32 [#allocation23], 4
      %s272 = int_to_ptr.vmem [resolvable:$true] %s271
      %277 = dma.hbm_to_vmem [thread:$0]  %s270, 512, %s272, [#allocation24], 128, 128, 8
    $region109: #{bert_for_regression.1} parent=1 // pred_fallthru
      _
    // Predicated region
    $region110: #{bert_for_regression.1} parent=1 // pred_check
      _
    $region111: #{bert_for_regression.1} parent=1 // pred_check_branch
      %279 = sbr.rel (0) target = $region113
    $region112: #{bert_for_regression.1} parent=1 // pred_region
      %281 = vsyncadd [#allocation24], 0
      %s283 = sshll.u32 %s55, 4
      %s284 = int_to_ptr.hbm [resolvable:$true] %s283
      %s285 = sshll.u32 [#allocation25], 4
      %s286 = int_to_ptr.vmem [resolvable:$true] %s285
      %288 = dma.hbm_to_vmem [thread:$0]  %s284, 16, %s286, [#allocation24]
    $region113: #{bert_for_regression.1} parent=1 // pred_fallthru
      _
    // Predicated region
    $region114: #{bert_for_regression.1} parent=1 // pred_check
      _
    $region115: #{bert_for_regression.1} parent=1 // pred_check_branch
      %290 = sbr.rel (0) target = $region117
    $region116: #{bert_for_regression.1} parent=1 // pred_region
      _
    $region117: #{bert_for_regression.1} parent=1 // pred_fallthru
      _
    // Predicated region
    $region118: #{bert_for_regression.1} parent=1 // pred_check
      _
    $region119: #{bert_for_regression.1} parent=1 // pred_check_branch
      %292 = sbr.rel (0) target = $region121
    $region120: #{bert_for_regression.1} parent=1 // pred_region
      _
    $region121: #{bert_for_regression.1} parent=1 // pred_fallthru
      _
    // Predicated region
    $region122: #{bert_for_regression.1} parent=1 // pred_check
      _
    $region123: #{bert_for_regression.1} parent=1 // pred_check_branch
      %294 = sbr.rel (0) target = $region125
    $region124: #{bert_for_regression.1} parent=1 // pred_region
      %296 = dma.done [#allocation4], 1024
    $region125: #{bert_for_regression.1} parent=1 // pred_fallthru
      _
    // Predicated region
    $region126: #{bert_for_regression.1} parent=1 // pred_check
      _
    $region127: #{bert_for_regression.1} parent=1 // pred_check_branch
      %298 = sbr.rel (0) target = $region129
    $region128: #{bert_for_regression.1} parent=1 // pred_region
      %300 = dma.done [#allocation6], 256
    $region129: #{bert_for_regression.1} parent=1 // pred_fallthru
      _
    // Predicated region
    $region130: #{bert_for_regression.1} parent=1 // pred_check
      _
    $region131: #{bert_for_regression.1} parent=1 // pred_check_branch
      %302 = sbr.rel (0) target = $region133
    $region132: #{bert_for_regression.1} parent=1 // pred_region
      %304 = dma.done [#allocation6], 32
    $region133: #{bert_for_regression.1} parent=1 // pred_fallthru
      _
    // Predicated region
    $region134: #{bert_for_regression.1} parent=1 // pred_check
      _
    $region135: #{bert_for_regression.1} parent=1 // pred_check_branch
      %306 = sbr.rel (0) target = $region137
    $region136: #{bert_for_regression.1} parent=1 // pred_region
      %308 = dma.done [#allocation9], 16
    $region137: #{bert_for_regression.1} parent=1 // pred_fallthru
      _
    // Predicated region
    $region138: #{bert_for_regression.1} parent=1 // pred_check
      _
    $region139: #{bert_for_regression.1} parent=1 // pred_check_branch
      %310 = sbr.rel (0) target = $region141
    $region140: #{bert_for_regression.1} parent=1 // pred_region
      %312 = dma.done [#allocation9], 16
    $region141: #{bert_for_regression.1} parent=1 // pred_fallthru
      _
    // Predicated region
    $region142: #{bert_for_regression.1} parent=1 // pred_check
      _
    $region143: #{bert_for_regression.1} parent=1 // pred_check_branch
      %314 = sbr.rel (0) target = $region145
    $region144: #{bert_for_regression.1} parent=1 // pred_region
      %316 = dma.done [#allocation12], 32
    $region145: #{bert_for_regression.1} parent=1 // pred_fallthru
      _
    // Predicated region
    $region146: #{bert_for_regression.1} parent=1 // pred_check
      _
    $region147: #{bert_for_regression.1} parent=1 // pred_check_branch
      %318 = sbr.rel (0) target = $region149
    $region148: #{bert_for_regression.1} parent=1 // pred_region
      %320 = dma.done [#allocation12], 32
    $region149: #{bert_for_regression.1} parent=1 // pred_fallthru
      _
    // Predicated region
    $region150: #{bert_for_regression.1} parent=1 // pred_check
      _
    $region151: #{bert_for_regression.1} parent=1 // pred_check_branch
      %322 = sbr.rel (0) target = $region153
    $region152: #{bert_for_regression.1} parent=1 // pred_region
      %324 = dma.done [#allocation15], 32
    $region153: #{bert_for_regression.1} parent=1 // pred_fallthru
      _
    // Predicated region
    $region154: #{bert_for_regression.1} parent=1 // pred_check
      _
    $region155: #{bert_for_regression.1} parent=1 // pred_check_branch
      %326 = sbr.rel (0) target = $region157
    $region156: #{bert_for_regression.1} parent=1 // pred_region
      %328 = dma.done [#allocation15], 32
    $region157: #{bert_for_regression.1} parent=1 // pred_fallthru
      _
    // Predicated region
    $region158: #{bert_for_regression.1} parent=1 // pred_check
      _
    $region159: #{bert_for_regression.1} parent=1 // pred_check_branch
      %330 = sbr.rel (0) target = $region161
    $region160: #{bert_for_regression.1} parent=1 // pred_region
      %332 = dma.done [#allocation18], 32
    $region161: #{bert_for_regression.1} parent=1 // pred_fallthru
      _
    // Predicated region
    $region162: #{bert_for_regression.1} parent=1 // pred_check
      _
    $region163: #{bert_for_regression.1} parent=1 // pred_check_branch
      %334 = sbr.rel (0) target = $region165
    $region164: #{bert_for_regression.1} parent=1 // pred_region
      %336 = dma.done [#allocation18], 32
    $region165: #{bert_for_regression.1} parent=1 // pred_fallthru
      _
    // Predicated region
    $region166: #{bert_for_regression.1} parent=1 // pred_check
      _
    $region167: #{bert_for_regression.1} parent=1 // pred_check_branch
      %338 = sbr.rel (0) target = $region169
    $region168: #{bert_for_regression.1} parent=1 // pred_region
      %340 = dma.done [#allocation21], 32
    $region169: #{bert_for_regression.1} parent=1 // pred_fallthru
      _
    // Predicated region
    $region170: #{bert_for_regression.1} parent=1 // pred_check
      _
    $region171: #{bert_for_regression.1} parent=1 // pred_check_branch
      %342 = sbr.rel (0) target = $region173
    $region172: #{bert_for_regression.1} parent=1 // pred_region
      %344 = dma.done [#allocation21], 32
    $region173: #{bert_for_regression.1} parent=1 // pred_fallthru
      _
    // Predicated region
    $region174: #{bert_for_regression.1} parent=1 // pred_check
      _
    $region175: #{bert_for_regression.1} parent=1 // pred_check_branch
      %346 = sbr.rel (0) target = $region177
    $region176: #{bert_for_regression.1} parent=1 // pred_region
      %348 = dma.done [#allocation24], 512
    $region177: #{bert_for_regression.1} parent=1 // pred_fallthru
      _
    // Predicated region
    $region178: #{bert_for_regression.1} parent=1 // pred_check
      _
    $region179: #{bert_for_regression.1} parent=1 // pred_check_branch
      %350 = sbr.rel (0) target = $region181
    $region180: #{bert_for_regression.1} parent=1 // pred_region
      %352 = dma.done [#allocation24], 16
    $region181: #{bert_for_regression.1} parent=1 // pred_fallthru
      _
    %v353 = vld [vmem:[%s1] sm:$0xff]
    %v354 = vld [vmem:[%s1 + $0x8] sm:$0xff]
    %v355 = vlaneseq
    %v356 = vand.u32 %v355, 127
    %357 = vset.pattern.permute.xlu0 0
    %358 = vperm.xlu0 %357, %v353
    %v359 = vpop.permute.xlu0 %358
    %360 = vset.pattern.permute.xlu0 0
    %361 = vperm.xlu0 %360, %v354
    %v362 = vpop.permute.xlu0 %361
    %vm363 = vcmp.eq.s32.totalorder %v356, %v359
    %vm364 = vcmp.eq.s32.totalorder %v356, %v362
    %v365 = vsel %vm363, 1, 0
    %v366 = vsel %vm364, 1, 0
    %v367 = vcvt.s32.f32 %v365
    %v368 = vcvt.s32.f32 %v366
    %v369 = vld [vmem:[%s19] sm:$0xff]
    %v370 = vld [vmem:[%s19 + $0x8] sm:$0xff]
    %v371 = vld [vmem:[%s19 + $0x10] sm:$0xff]
    %v372 = vld [vmem:[%s19 + $0x18] sm:$0xff]
    %v373 = vld [vmem:[%s19 + $0x20] sm:$0xff]
    %v374 = vld [vmem:[%s19 + $0x28] sm:$0xff]
    %v375 = vld [vmem:[%s19 + $0x30] sm:$0xff]
    %v376 = vld [vmem:[%s19 + $0x38] sm:$0xff]
    %v377 = vld [vmem:[%s19 + $0x40] sm:$0xff]
    %v378 = vld [vmem:[%s19 + $0x48] sm:$0xff]
    %v379 = vld [vmem:[%s19 + $0x50] sm:$0xff]
    %v380 = vld [vmem:[%s19 + $0x58] sm:$0xff]
    %v381 = vld [vmem:[%s19 + $0x60] sm:$0xff]
    %v382 = vld [vmem:[%s19 + $0x68] sm:$0xff]
    %v383 = vld [vmem:[%s19 + $0x70] sm:$0xff]
    %v384 = vld [vmem:[%s19 + $0x78] sm:$0xff]
    %v385 = vld [vmem:[%s15] sm:$0xff]
    %v386 = vld [vmem:[%s15 + $0x8] sm:$0xff]
    %v387 = vld [vmem:[%s21] sm:$0xff]
    %v388 = vld [vmem:[%s21 + $0x8] sm:$0xff]
    %vm389 = vcmask 130048
    %v391 = vsel %vm389, %v385, 0
    %v394 = vsel %vm389, %v386, 0
    %396 = vmatpush.msra.mxu0 0.0
    %397 = vmatpush.msra.mxu0 0.0
    %398 = vmatpush.msra.mxu0 0.0
    %399 = vmatpush.msra.mxu0 0.0
    %400 = vmatpush.msra.mxu0 0.0
    %401 = vmatpush.msra.mxu0 0.0
    %402 = vmatpush.msra.mxu0 0.0
    %403 = vmatpush.msra.mxu0 0.0
    %404 = vmatpush.msra.mxu0 0.0
    %405 = vmatpush.msra.mxu0 0.0
    %406 = vmatpush.msra.mxu0 0.0
    %407 = vmatpush.msra.mxu0 0.0
    %408 = vmatpush.msra.mxu0 0.0
    %409 = vmatpush.msra.mxu0 0.0
    %410 = vmatpush.msra.mxu0 %v388
    %411 = vmatpush.msra.mxu0 %v387
    %412 = vmatmul.f32.gmra.mxu0 %v391
    %v413 = vpop.f32.mrf.mxu0
    %v414 = vadd.f32 0.0, %v413
    %415 = vmatmul.f32.gmra.mxu0 %v394
    %v416 = vpop.f32.mrf.mxu0
    %v417 = vadd.f32 0.0, %v416
    %418 = vdwg.mxu0
    %419 = vmatpush.msra.mxu0 %v384
    %420 = vmatpush.msra.mxu0 %v383
    %421 = vmatpush.msra.mxu0 %v382
    %422 = vmatpush.msra.mxu0 %v381
    %423 = vmatpush.msra.mxu0 %v380
    %424 = vmatpush.msra.mxu0 %v379
    %425 = vmatpush.msra.mxu0 %v378
    %426 = vmatpush.msra.mxu0 %v377
    %427 = vmatpush.msra.mxu0 %v376
    %428 = vmatpush.msra.mxu0 %v375
    %429 = vmatpush.msra.mxu0 %v374
    %430 = vmatpush.msra.mxu0 %v373
    %431 = vmatpush.msra.mxu0 %v372
    %432 = vmatpush.msra.mxu0 %v371
    %433 = vmatpush.msra.mxu0 %v370
    %434 = vmatpush.msra.mxu0 %v369
    %435 = vmatmul.f32.gmra.mxu0 %v367
    %v436 = vpop.f32.mrf.mxu0
    %v437 = vadd.f32 %v414, %v436
    %438 = vmatmul.f32.gmra.mxu0 %v368
    %v439 = vpop.f32.mrf.mxu0
    %v440 = vadd.f32 %v417, %v439
    %441 = vdwg.mxu0
    %v442 = vld [vmem:[%s3] sm:$0xff]
    %v443 = vld [vmem:[%s3 + $0x8] sm:$0xff]
    %vm444 = vcmp.eq.s32.totalorder %v442, 0
    %vm445 = vcmp.eq.s32.totalorder %v443, 0
    %v446 = vld [vmem:[%s23] sm:$0x1]
    %v447 = vld [vmem:[%s23 + $0x1] sm:$0x1]
    %v448 = vsel %vm444, 1, 0
    %v449 = vsel %vm445, 1, 0
    %450 = vset.pattern.permute.xlu0 0
    %451 = vperm.xlu0 %450, %v448
    %v452 = vpop.permute.xlu0 %451
    %453 = vset.pattern.permute.xlu0 0
    %454 = vperm.xlu0 %453, %v449
    %v455 = vpop.permute.xlu0 %454
    %vm456 = vcmp.eq.s32.totalorder %v452, 1
    %vm457 = vcmp.eq.s32.totalorder %v455, 1
    %v458 = vperm.slane %v446, 0
    %v459 = vperm.slane %v447, 0
    %v460 = vsel %vm456, %v458, %v459
    %v461 = vsel %vm457, %v458, %v459
    %v462 = vadd.f32 %v437, %v460
    %v463 = vadd.f32 %v440, %v461
    %v464 = vld [vmem:[#allocation8] sm:$0x1]
    %v465 = vld [vmem:[#allocation10] sm:$0x1]
    %vm466 = vcmask 261120
    %v467 = vsel %vm466, %v462, 0.0
    %468 = vadd.xlane.f32.xlu0 %v467
    %v469 = vpop.xlane.xlu0 %468
    %v470 = vsel %vm466, %v463, 0.0
    %471 = vadd.xlane.f32.xlu0 %v470
    %v472 = vpop.xlane.xlu0 %471
    %v473 = vrcp.pop 32.0
    %v474 = vmul.f32 32.0, %v473
    %v475 = vsub.f32 1.0, %v474
    %v476 = vmul.f32 %v473, %v475
    %v477 = vadd.f32 %v473, %v476
    %vm478 = vweird.f32 %v473
    %v479 = vsel %vm478, %v473, %v477
    %v480 = vmul.f32 %v469, %v479
    %v481 = vmul.f32 %v472, %v479
    %v482 = vsub.f32 %v462, %v480
    %v483 = vsub.f32 %v463, %v481
    %v484 = vmul.f32 %v482, %v482
    %v485 = vmul.f32 %v483, %v483
    %v486 = vsel %vm466, %v484, 0.0
    %487 = vadd.xlane.f32.xlu0 %v486
    %v488 = vpop.xlane.xlu0 %487
    %v489 = vsel %vm466, %v485, 0.0
    %490 = vadd.xlane.f32.xlu0 %v489
    %v491 = vpop.xlane.xlu0 %490
    %v492 = vmul.f32 %v488, %v479
    %v493 = vmul.f32 %v491, %v479
    %v494 = vadd.f32 %v492, 1e-12
    %v495 = vadd.f32 %v493, 1e-12
    %v496 = vrsqrt.pop %v494
    %v497 = vmul.f32 %v496, %v494
    %v498 = vmul.f32 %v497, %v496
    %v499 = vmul.f32 0.5, %v498
    %v500 = vsub.f32 1.5, %v499
    %v501 = vmul.f32 %v496, %v500
    %vm502 = vweird.f32 %v494
    %vm503 = vweird.f32 %v496
    %vm504 = vmor %vm502, %vm503
    %v505 = vsel %vm504, %v496, %v501
    %v506 = vrsqrt.pop %v495
    %v507 = vmul.f32 %v506, %v495
    %v508 = vmul.f32 %v507, %v506
    %v509 = vmul.f32 0.5, %v508
    %v510 = vsub.f32 1.5, %v509
    %v511 = vmul.f32 %v506, %v510
    %vm512 = vweird.f32 %v495
    %vm513 = vweird.f32 %v506
    %vm514 = vmor %vm512, %vm513
    %v515 = vsel %vm514, %v506, %v511
    %v516 = vmul.f32 %v482, %v505
    %v517 = vmul.f32 %v483, %v515
    %v519 = vperm.slane %v464, 0
    %v521 = vmul.f32 %v516, %v519
    %v522 = vmul.f32 %v517, %v519
    %v524 = vperm.slane %v465, 0
    %v526 = vadd.f32 %v521, %v524
    %v527 = vadd.f32 %v522, %v524
    %v528 = vld [vmem:[#allocation3] sm:$0xff]
    %v529 = vld [vmem:[#allocation3 + $0x8] sm:$0xff]
    %v530 = vld [vmem:[#allocation3 + $0x10] sm:$0xff]
    %v531 = vld [vmem:[#allocation3 + $0x18] sm:$0xff]
    %v532 = vld [vmem:[#allocation3 + $0x20] sm:$0xff]
    %v533 = vld [vmem:[#allocation3 + $0x28] sm:$0xff]
    %v534 = vld [vmem:[#allocation3 + $0x30] sm:$0xff]
    %v535 = vld [vmem:[#allocation3 + $0x38] sm:$0xff]
    %v536 = vld [vmem:[%s9] sm:$0xff]
    %v537 = vld [vmem:[%s9 + $0x8] sm:$0xff]
    %v538 = vld [vmem:[%s9 + $0x10] sm:$0xff]
    %v539 = vld [vmem:[%s9 + $0x18] sm:$0xff]
    %v540 = vld [vmem:[%s9 + $0x20] sm:$0xff]
    %v541 = vld [vmem:[%s9 + $0x28] sm:$0xff]
    %v542 = vld [vmem:[%s9 + $0x30] sm:$0xff]
    %v543 = vld [vmem:[%s9 + $0x38] sm:$0xff]
    %v544 = vld [vmem:[%s11] sm:$0xff]
    %v545 = vld [vmem:[%s11 + $0x8] sm:$0xff]
    %v546 = vld [vmem:[%s11 + $0x10] sm:$0xff]
    %v547 = vld [vmem:[%s11 + $0x18] sm:$0xff]
    %v548 = vld [vmem:[%s11 + $0x20] sm:$0xff]
    %v549 = vld [vmem:[%s11 + $0x28] sm:$0xff]
    %v550 = vld [vmem:[%s11 + $0x30] sm:$0xff]
    %v551 = vld [vmem:[%s11 + $0x38] sm:$0xff]
    %v552 = vld [vmem:[#allocation5] sm:$0xff]
    %v553 = vld [vmem:[#allocation5 + $0x8] sm:$0xff]
    %v554 = vld [vmem:[%s5] sm:$0x1]
    %v556 = vsel %vm389, %v554, 0
    %v559 = vsel %vm389, %v528, 0
    %v562 = vsel %vm389, %v529, 0
    %v565 = vsel %vm389, %v530, 0
    %v568 = vsel %vm389, %v531, 0
    %v571 = vsel %vm389, %v532, 0
    %v574 = vsel %vm389, %v533, 0
    %v577 = vsel %vm389, %v534, 0
    %v580 = vsel %vm389, %v535, 0
    %582 = vmatpush.xpose.msra.mxu0 0.0
    %583 = vmatpush.xpose.msra.mxu0 0.0
    %584 = vmatpush.xpose.msra.mxu0 0.0
    %585 = vmatpush.xpose.msra.mxu0 0.0
    %586 = vmatpush.xpose.msra.mxu0 0.0
    %587 = vmatpush.xpose.msra.mxu0 0.0
    %588 = vmatpush.xpose.msra.mxu0 0.0
    %589 = vmatpush.xpose.msra.mxu0 0.0
    %590 = vmatpush.xpose.msra.mxu0 %v580
    %591 = vmatpush.xpose.msra.mxu0 %v577
    %592 = vmatpush.xpose.msra.mxu0 %v574
    %593 = vmatpush.xpose.msra.mxu0 %v571
    %594 = vmatpush.xpose.msra.mxu0 %v568
    %595 = vmatpush.xpose.msra.mxu0 %v565
    %596 = vmatpush.xpose.msra.mxu0 %v562
    %597 = vmatpush.xpose.msra.mxu0 %v559
    %598 = vmatmul.f32.gmra.mxu0 %v556
    %v599 = vpop.f32.mrf.mxu0
    %v600 = vadd.f32 0.0, %v599
    %601 = vdwg.mxu0
    %v602 = vsub.f32 1.0, %v552
    %v603 = vsub.f32 1.0, %v553
    %v604 = vperm.slane %v600, 0
    %v605 = vmul.f32 %v602, %v604
    %v606 = vmul.f32 %v603, %v604
    %vm607 = vcmp.gt.f32.partialorder %v605, 0.5
    %vm608 = vcmp.gt.f32.partialorder %v606, 0.5
    %v609 = vsel %vm607, 0.0, -1e+09
    %v610 = vsel %vm608, 0.0, -1e+09
    %v611 = vld [vmem:[%s29] sm:$0xff]
    %v612 = vld [vmem:[%s29 + $0x8] sm:$0xff]
    %v613 = vld [vmem:[%s29 + $0x10] sm:$0xff]
    %v614 = vld [vmem:[%s29 + $0x18] sm:$0xff]
    %v615 = vld [vmem:[#allocation11] sm:$0x1]
    %v617 = vperm.slane %v615, 0
    %v620 = vsel %vm466, %v526, 0
    %v623 = vsel %vm466, %v527, 0
    %625 = vmatpush.msra.mxu0 0.0
    %626 = vmatpush.msra.mxu0 0.0
    %627 = vmatpush.msra.mxu0 0.0
    %628 = vmatpush.msra.mxu0 0.0
    %629 = vmatpush.msra.mxu0 0.0
    %630 = vmatpush.msra.mxu0 0.0
    %631 = vmatpush.msra.mxu0 0.0
    %632 = vmatpush.msra.mxu0 0.0
    %633 = vmatpush.msra.mxu0 0.0
    %634 = vmatpush.msra.mxu0 0.0
    %635 = vmatpush.msra.mxu0 0.0
    %636 = vmatpush.msra.mxu0 0.0
    %637 = vmatpush.msra.mxu0 %v614
    %638 = vmatpush.msra.mxu0 %v613
    %639 = vmatpush.msra.mxu0 %v612
    %640 = vmatpush.msra.mxu0 %v611
    %641 = vmatmul.f32.gmra.mxu0 %v620
    %v642 = vpop.f32.mrf.mxu0
    %v643 = vadd.f32 %v617, %v642
    %644 = vmatmul.f32.gmra.mxu0 %v623
    %v645 = vpop.f32.mrf.mxu0
    %v646 = vadd.f32 %v617, %v645
    %647 = vdwg.mxu0
    %650 = vrot.lane.b32.xlu0 %v643, 96
    %v651 = vpop.permute.xlu0 %650
    %652 = vrot.lane.b32.xlu0 %v646, 96
    %v653 = vpop.permute.xlu0 %652
    %656 = vmatpush.msra.mxu0 0.0
    %657 = vmatpush.msra.mxu0 0.0
    %658 = vmatpush.msra.mxu0 0.0
    %659 = vmatpush.msra.mxu0 0.0
    %660 = vmatpush.msra.mxu0 0.0
    %661 = vmatpush.msra.mxu0 0.0
    %662 = vmatpush.msra.mxu0 0.0
    %663 = vmatpush.msra.mxu0 0.0
    %664 = vmatpush.msra.mxu0 0.0
    %665 = vmatpush.msra.mxu0 0.0
    %666 = vmatpush.msra.mxu0 0.0
    %667 = vmatpush.msra.mxu0 0.0
    %668 = vmatpush.msra.mxu0 0.0
    %669 = vmatpush.msra.mxu0 0.0
    %670 = vmatpush.msra.mxu0 %v653
    %671 = vmatpush.msra.mxu0 %v651
    %672 = vmatmul.f32.gmra.mxu0 %v559
    %v673 = vpop.f32.mrf.mxu0
    %v674 = vadd.f32 0.0, %v673
    %675 = vmatmul.f32.gmra.mxu0 %v562
    %v676 = vpop.f32.mrf.mxu0
    %v677 = vadd.f32 0.0, %v676
    %678 = vmatmul.f32.gmra.mxu0 %v565
    %v679 = vpop.f32.mrf.mxu0
    %v680 = vadd.f32 0.0, %v679
    %681 = vmatmul.f32.gmra.mxu0 %v568
    %v682 = vpop.f32.mrf.mxu0
    %v683 = vadd.f32 0.0, %v682
    %684 = vmatmul.f32.gmra.mxu0 %v571
    %v685 = vpop.f32.mrf.mxu0
    %v686 = vadd.f32 0.0, %v685
    %687 = vmatmul.f32.gmra.mxu0 %v574
    %v688 = vpop.f32.mrf.mxu0
    %v689 = vadd.f32 0.0, %v688
    %690 = vmatmul.f32.gmra.mxu0 %v577
    %v691 = vpop.f32.mrf.mxu0
    %v692 = vadd.f32 0.0, %v691
    %693 = vmatmul.f32.gmra.mxu0 %v580
    %v694 = vpop.f32.mrf.mxu0
    %v695 = vadd.f32 0.0, %v694
    %696 = vdwg.mxu0
    %v697 = vmul.f32 %v674, %v536
    %v698 = vmul.f32 %v677, %v537
    %v699 = vmul.f32 %v680, %v538
    %v700 = vmul.f32 %v683, %v539
    %v701 = vmul.f32 %v686, %v540
    %v702 = vmul.f32 %v689, %v541
    %v703 = vmul.f32 %v692, %v542
    %v704 = vmul.f32 %v695, %v543
    %705 = vrot.lane.b32.xlu0 %v643, 64
    %v706 = vpop.permute.xlu0 %705
    %707 = vrot.lane.b32.xlu0 %v646, 64
    %v708 = vpop.permute.xlu0 %707
    %711 = vmatpush.msra.mxu0 0.0
    %712 = vmatpush.msra.mxu0 0.0
    %713 = vmatpush.msra.mxu0 0.0
    %714 = vmatpush.msra.mxu0 0.0
    %715 = vmatpush.msra.mxu0 0.0
    %716 = vmatpush.msra.mxu0 0.0
    %717 = vmatpush.msra.mxu0 0.0
    %718 = vmatpush.msra.mxu0 0.0
    %719 = vmatpush.msra.mxu0 0.0
    %720 = vmatpush.msra.mxu0 0.0
    %721 = vmatpush.msra.mxu0 0.0
    %722 = vmatpush.msra.mxu0 0.0
    %723 = vmatpush.msra.mxu0 0.0
    %724 = vmatpush.msra.mxu0 0.0
    %725 = vmatpush.msra.mxu0 %v708
    %726 = vmatpush.msra.mxu0 %v706
    %727 = vmatmul.f32.gmra.mxu0 %v559
    %v728 = vpop.f32.mrf.mxu0
    %v729 = vadd.f32 0.0, %v728
    %730 = vmatmul.f32.gmra.mxu0 %v562
    %v731 = vpop.f32.mrf.mxu0
    %v732 = vadd.f32 0.0, %v731
    %733 = vmatmul.f32.gmra.mxu0 %v565
    %v734 = vpop.f32.mrf.mxu0
    %v735 = vadd.f32 0.0, %v734
    %736 = vmatmul.f32.gmra.mxu0 %v568
    %v737 = vpop.f32.mrf.mxu0
    %v738 = vadd.f32 0.0, %v737
    %739 = vmatmul.f32.gmra.mxu0 %v571
    %v740 = vpop.f32.mrf.mxu0
    %v741 = vadd.f32 0.0, %v740
    %742 = vmatmul.f32.gmra.mxu0 %v574
    %v743 = vpop.f32.mrf.mxu0
    %v744 = vadd.f32 0.0, %v743
    %745 = vmatmul.f32.gmra.mxu0 %v577
    %v746 = vpop.f32.mrf.mxu0
    %v747 = vadd.f32 0.0, %v746
    %748 = vmatmul.f32.gmra.mxu0 %v580
    %v749 = vpop.f32.mrf.mxu0
    %v750 = vadd.f32 0.0, %v749
    %751 = vdwg.mxu0
    %v752 = vmul.f32 %v729, %v536
    %v753 = vmul.f32 %v732, %v537
    %v754 = vmul.f32 %v735, %v538
    %v755 = vmul.f32 %v738, %v539
    %v756 = vmul.f32 %v741, %v540
    %v757 = vmul.f32 %v744, %v541
    %v758 = vmul.f32 %v747, %v542
    %v759 = vmul.f32 %v750, %v543
    %v760 = vsel %vm466, %v643, 0
    %v762 = vsel %vm466, %v646, 0
    %v765 = vsel %vm466, %v697, 0
    %v768 = vsel %vm466, %v698, 0
    %v771 = vsel %vm466, %v699, 0
    %v774 = vsel %vm466, %v700, 0
    %v777 = vsel %vm466, %v701, 0
    %v780 = vsel %vm466, %v702, 0
    %v783 = vsel %vm466, %v703, 0
    %v786 = vsel %vm466, %v704, 0
    %788 = vmatpush.xpose.msra.mxu0 0.0
    %789 = vmatpush.xpose.msra.mxu0 0.0
    %790 = vmatpush.xpose.msra.mxu0 0.0
    %791 = vmatpush.xpose.msra.mxu0 0.0
    %792 = vmatpush.xpose.msra.mxu0 0.0
    %793 = vmatpush.xpose.msra.mxu0 0.0
    %794 = vmatpush.xpose.msra.mxu0 0.0
    %795 = vmatpush.xpose.msra.mxu0 0.0
    %796 = vmatpush.xpose.msra.mxu0 %v786
    %797 = vmatpush.xpose.msra.mxu0 %v783
    %798 = vmatpush.xpose.msra.mxu0 %v780
    %799 = vmatpush.xpose.msra.mxu0 %v777
    %800 = vmatpush.xpose.msra.mxu0 %v774
    %801 = vmatpush.xpose.msra.mxu0 %v771
    %802 = vmatpush.xpose.msra.mxu0 %v768
    %803 = vmatpush.xpose.msra.mxu0 %v765
    %804 = vmatmul.f32.gmra.mxu0 %v760
    %v805 = vpop.f32.mrf.mxu0
    %v806 = vadd.f32 %v609, %v805
    %807 = vmatmul.f32.gmra.mxu0 %v762
    %v808 = vpop.f32.mrf.mxu0
    %v809 = vadd.f32 %v610, %v808
    %810 = vdwg.mxu0
    %vm811 = vcmask 523264
    %v812 = vsel %vm811, %v806, -inf
    %813 = vmax.xlane.f32.xlu0 %v812
    %v814 = vpop.xlane.xlu0 %813
    %v815 = vsel %vm811, %v809, -inf
    %816 = vmax.xlane.f32.xlu0 %v815
    %v817 = vpop.xlane.xlu0 %816
    %v818 = vsub.f32 %v806, %v814
    %v819 = vsub.f32 %v809, %v817
    %v820 = vmul.f32 %v818, 1.442695
    %v821 = vpow.pop %v820
    %v822 = vmul.f32 %v819, 1.442695
    %v823 = vpow.pop %v822
    %v825 = vsel %vm811, %v821, 0
    %v828 = vsel %vm811, %v823, 0
    %830 = vmatpush.msra.mxu0 0.0
    %831 = vmatpush.msra.mxu0 0.0
    %832 = vmatpush.msra.mxu0 0.0
    %833 = vmatpush.msra.mxu0 0.0
    %834 = vmatpush.msra.mxu0 0.0
    %835 = vmatpush.msra.mxu0 0.0
    %836 = vmatpush.msra.mxu0 0.0
    %837 = vmatpush.msra.mxu0 0.0
    %838 = vmatpush.msra.mxu0 %v551
    %839 = vmatpush.msra.mxu0 %v550
    %840 = vmatpush.msra.mxu0 %v549
    %841 = vmatpush.msra.mxu0 %v548
    %842 = vmatpush.msra.mxu0 %v547
    %843 = vmatpush.msra.mxu0 %v546
    %844 = vmatpush.msra.mxu0 %v545
    %845 = vmatpush.msra.mxu0 %v544
    %846 = vmatmul.f32.gmra.mxu0 %v825
    %v847 = vpop.f32.mrf.mxu0
    %v848 = vadd.f32 %v552, %v847
    %849 = vmatmul.f32.gmra.mxu0 %v828
    %v850 = vpop.f32.mrf.mxu0
    %v851 = vadd.f32 %v553, %v850
    %852 = vdwg.mxu0
    %v853 = vrcp.pop %v848
    %v854 = vrcp.pop %v851
    %v855 = vmul.f32 %v821, %v853
    %v856 = vmul.f32 %v823, %v854
    %v858 = vsel %vm811, %v855, 0
    %v861 = vsel %vm811, %v856, 0
    %863 = vmatpush.msra.mxu0 0.0
    %864 = vmatpush.msra.mxu0 0.0
    %865 = vmatpush.msra.mxu0 0.0
    %866 = vmatpush.msra.mxu0 0.0
    %867 = vmatpush.msra.mxu0 0.0
    %868 = vmatpush.msra.mxu0 0.0
    %869 = vmatpush.msra.mxu0 0.0
    %870 = vmatpush.msra.mxu0 0.0
    %871 = vmatpush.msra.mxu0 %v759
    %872 = vmatpush.msra.mxu0 %v758
    %873 = vmatpush.msra.mxu0 %v757
    %874 = vmatpush.msra.mxu0 %v756
    %875 = vmatpush.msra.mxu0 %v755
    %876 = vmatpush.msra.mxu0 %v754
    %877 = vmatpush.msra.mxu0 %v753
    %878 = vmatpush.msra.mxu0 %v752
    %879 = vmatmul.f32.gmra.mxu0 %v858
    %v880 = vpop.f32.mrf.mxu0
    %v881 = vadd.f32 0.0, %v880
    %882 = vmatmul.f32.gmra.mxu0 %v861
    %v883 = vpop.f32.mrf.mxu0
    %v884 = vadd.f32 0.0, %v883
    %885 = vdwg.mxu0
    %v886 = vld [vmem:[%s33] sm:$0xff]
    %v887 = vld [vmem:[%s33 + $0x8] sm:$0xff]
    %v888 = vld [vmem:[%s33 + $0x10] sm:$0xff]
    %v889 = vld [vmem:[%s33 + $0x18] sm:$0xff]
    %v890 = vld [vmem:[#allocation13] sm:$0x1]
    %v892 = vperm.slane %v890, 0
    %v895 = vsel %vm466, %v881, 0
    %v898 = vsel %vm466, %v884, 0
    %900 = vmatpush.msra.mxu0 0.0
    %901 = vmatpush.msra.mxu0 0.0
    %902 = vmatpush.msra.mxu0 0.0
    %903 = vmatpush.msra.mxu0 0.0
    %904 = vmatpush.msra.mxu0 0.0
    %905 = vmatpush.msra.mxu0 0.0
    %906 = vmatpush.msra.mxu0 0.0
    %907 = vmatpush.msra.mxu0 0.0
    %908 = vmatpush.msra.mxu0 0.0
    %909 = vmatpush.msra.mxu0 0.0
    %910 = vmatpush.msra.mxu0 0.0
    %911 = vmatpush.msra.mxu0 0.0
    %912 = vmatpush.msra.mxu0 %v889
    %913 = vmatpush.msra.mxu0 %v888
    %914 = vmatpush.msra.mxu0 %v887
    %915 = vmatpush.msra.mxu0 %v886
    %916 = vmatmul.f32.gmra.mxu0 %v895
    %v917 = vpop.f32.mrf.mxu0
    %v918 = vadd.f32 %v892, %v917
    %919 = vmatmul.f32.gmra.mxu0 %v898
    %v920 = vpop.f32.mrf.mxu0
    %v921 = vadd.f32 %v892, %v920
    %922 = vdwg.mxu0
    %v923 = vadd.f32 %v918, %v526
    %v924 = vadd.f32 %v921, %v527
    %v925 = vld [vmem:[#allocation14] sm:$0x1]
    %v926 = vld [vmem:[#allocation16] sm:$0x1]
    %v927 = vsel %vm466, %v923, 0.0
    %928 = vadd.xlane.f32.xlu0 %v927
    %v929 = vpop.xlane.xlu0 %928
    %v930 = vsel %vm466, %v924, 0.0
    %931 = vadd.xlane.f32.xlu0 %v930
    %v932 = vpop.xlane.xlu0 %931
    %v933 = vmul.f32 %v929, %v479
    %v934 = vmul.f32 %v932, %v479
    %v935 = vsub.f32 %v923, %v933
    %v936 = vsub.f32 %v924, %v934
    %v937 = vmul.f32 %v935, %v935
    %v938 = vmul.f32 %v936, %v936
    %v939 = vsel %vm466, %v937, 0.0
    %940 = vadd.xlane.f32.xlu0 %v939
    %v941 = vpop.xlane.xlu0 %940
    %v942 = vsel %vm466, %v938, 0.0
    %943 = vadd.xlane.f32.xlu0 %v942
    %v944 = vpop.xlane.xlu0 %943
    %v945 = vmul.f32 %v941, %v479
    %v946 = vmul.f32 %v944, %v479
    %v947 = vadd.f32 %v945, 1e-12
    %v948 = vadd.f32 %v946, 1e-12
    %v949 = vrsqrt.pop %v947
    %v950 = vmul.f32 %v949, %v947
    %v951 = vmul.f32 %v950, %v949
    %v952 = vmul.f32 0.5, %v951
    %v953 = vsub.f32 1.5, %v952
    %v954 = vmul.f32 %v949, %v953
    %vm955 = vweird.f32 %v947
    %vm956 = vweird.f32 %v949
    %vm957 = vmor %vm955, %vm956
    %v958 = vsel %vm957, %v949, %v954
    %v959 = vrsqrt.pop %v948
    %v960 = vmul.f32 %v959, %v948
    %v961 = vmul.f32 %v960, %v959
    %v962 = vmul.f32 0.5, %v961
    %v963 = vsub.f32 1.5, %v962
    %v964 = vmul.f32 %v959, %v963
    %vm965 = vweird.f32 %v948
    %vm966 = vweird.f32 %v959
    %vm967 = vmor %vm965, %vm966
    %v968 = vsel %vm967, %v959, %v964
    %v969 = vmul.f32 %v935, %v958
    %v970 = vmul.f32 %v936, %v968
    %v972 = vperm.slane %v925, 0
    %v974 = vmul.f32 %v969, %v972
    %v975 = vmul.f32 %v970, %v972
    %v977 = vperm.slane %v926, 0
    %v979 = vadd.f32 %v974, %v977
    %v980 = vadd.f32 %v975, %v977
    %v981 = vld [vmem:[%s41] sm:$0xff]
    %v982 = vld [vmem:[%s41 + $0x8] sm:$0xff]
    %v983 = vld [vmem:[%s41 + $0x10] sm:$0xff]
    %v984 = vld [vmem:[%s41 + $0x18] sm:$0xff]
    %v985 = vld [vmem:[#allocation17] sm:$0x1]
    %v987 = vperm.slane %v985, 0
    %v990 = vsel %vm466, %v979, 0
    %v993 = vsel %vm466, %v980, 0
    %995 = vmatpush.msra.mxu0 0.0
    %996 = vmatpush.msra.mxu0 0.0
    %997 = vmatpush.msra.mxu0 0.0
    %998 = vmatpush.msra.mxu0 0.0
    %999 = vmatpush.msra.mxu0 0.0
    %1000 = vmatpush.msra.mxu0 0.0
    %1001 = vmatpush.msra.mxu0 0.0
    %1002 = vmatpush.msra.mxu0 0.0
    %1003 = vmatpush.msra.mxu0 0.0
    %1004 = vmatpush.msra.mxu0 0.0
    %1005 = vmatpush.msra.mxu0 0.0
    %1006 = vmatpush.msra.mxu0 0.0
    %1007 = vmatpush.msra.mxu0 %v984
    %1008 = vmatpush.msra.mxu0 %v983
    %1009 = vmatpush.msra.mxu0 %v982
    %1010 = vmatpush.msra.mxu0 %v981
    %1011 = vmatmul.f32.gmra.mxu0 %v990
    %v1012 = vpop.f32.mrf.mxu0
    %v1013 = vadd.f32 %v987, %v1012
    %1014 = vmatmul.f32.gmra.mxu0 %v993
    %v1015 = vpop.f32.mrf.mxu0
    %v1016 = vadd.f32 %v987, %v1015
    %1017 = vdwg.mxu0
    %v1018 = vmul.f32 %v1013, 0.5
    %v1019 = vmul.f32 %v1016, 0.5
    %v1020 = vmul.f32 %v1013, 0.044715
    %v1021 = vmul.f32 %v1016, 0.044715
    %v1022 = vmul.f32 %v1020, %v1013
    %v1023 = vmul.f32 %v1021, %v1016
    %v1024 = vmul.f32 %v1022, %v1013
    %v1025 = vmul.f32 %v1023, %v1016
    %v1026 = vadd.f32 %v1013, %v1024
    %v1027 = vadd.f32 %v1016, %v1025
    %v1028 = vmul.f32 %v1026, 0.7978846
    %v1029 = vmul.f32 %v1027, 0.7978846
    %v1030 = vtanh.pop %v1028
    %v1031 = vtanh.pop %v1029
    %v1032 = vadd.f32 %v1030, 1.0
    %v1033 = vadd.f32 %v1031, 1.0
    %v1034 = vmul.f32 %v1018, %v1032
    %v1035 = vmul.f32 %v1019, %v1033
    %v1036 = vld [vmem:[%s45] sm:$0xff]
    %v1037 = vld [vmem:[%s45 + $0x8] sm:$0xff]
    %v1038 = vld [vmem:[%s45 + $0x10] sm:$0xff]
    %v1039 = vld [vmem:[%s45 + $0x18] sm:$0xff]
    %v1040 = vld [vmem:[%s45 + $0x20] sm:$0xff]
    %v1041 = vld [vmem:[%s45 + $0x28] sm:$0xff]
    %v1042 = vld [vmem:[%s45 + $0x30] sm:$0xff]
    %v1043 = vld [vmem:[%s45 + $0x38] sm:$0xff]
    %v1044 = vld [vmem:[#allocation19] sm:$0x1]
    %v1046 = vperm.slane %v1044, 0
    %v1049 = vsel %vm811, %v1034, 0
    %v1052 = vsel %vm811, %v1035, 0
    %1054 = vmatpush.msra.mxu0 0.0
    %1055 = vmatpush.msra.mxu0 0.0
    %1056 = vmatpush.msra.mxu0 0.0
    %1057 = vmatpush.msra.mxu0 0.0
    %1058 = vmatpush.msra.mxu0 0.0
    %1059 = vmatpush.msra.mxu0 0.0
    %1060 = vmatpush.msra.mxu0 0.0
    %1061 = vmatpush.msra.mxu0 0.0
    %1062 = vmatpush.msra.mxu0 %v1043
    %1063 = vmatpush.msra.mxu0 %v1042
    %1064 = vmatpush.msra.mxu0 %v1041
    %1065 = vmatpush.msra.mxu0 %v1040
    %1066 = vmatpush.msra.mxu0 %v1039
    %1067 = vmatpush.msra.mxu0 %v1038
    %1068 = vmatpush.msra.mxu0 %v1037
    %1069 = vmatpush.msra.mxu0 %v1036
    %1070 = vmatmul.f32.gmra.mxu0 %v1049
    %v1071 = vpop.f32.mrf.mxu0
    %v1072 = vadd.f32 %v1046, %v1071
    %1073 = vmatmul.f32.gmra.mxu0 %v1052
    %v1074 = vpop.f32.mrf.mxu0
    %v1075 = vadd.f32 %v1046, %v1074
    %1076 = vdwg.mxu0
    %v1077 = vadd.f32 %v1072, %v979
    %v1078 = vadd.f32 %v1075, %v980
    %v1079 = vld [vmem:[#allocation20] sm:$0x1]
    %v1080 = vld [vmem:[#allocation22] sm:$0x1]
    %v1081 = vsel %vm466, %v1077, 0.0
    %1082 = vadd.xlane.f32.xlu0 %v1081
    %v1083 = vpop.xlane.xlu0 %1082
    %v1084 = vsel %vm466, %v1078, 0.0
    %1085 = vadd.xlane.f32.xlu0 %v1084
    %v1086 = vpop.xlane.xlu0 %1085
    %v1087 = vmul.f32 %v1083, %v479
    %v1088 = vmul.f32 %v1086, %v479
    %v1089 = vsub.f32 %v1077, %v1087
    %v1090 = vsub.f32 %v1078, %v1088
    %v1091 = vmul.f32 %v1089, %v1089
    %v1092 = vmul.f32 %v1090, %v1090
    %v1093 = vsel %vm466, %v1091, 0.0
    %1094 = vadd.xlane.f32.xlu0 %v1093
    %v1095 = vpop.xlane.xlu0 %1094
    %v1096 = vsel %vm466, %v1092, 0.0
    %1097 = vadd.xlane.f32.xlu0 %v1096
    %v1098 = vpop.xlane.xlu0 %1097
    %v1099 = vmul.f32 %v1095, %v479
    %v1100 = vmul.f32 %v1098, %v479
    %v1101 = vadd.f32 %v1099, 1e-12
    %v1102 = vadd.f32 %v1100, 1e-12
    %v1103 = vrsqrt.pop %v1101
    %v1104 = vmul.f32 %v1103, %v1101
    %v1105 = vmul.f32 %v1104, %v1103
    %v1106 = vmul.f32 0.5, %v1105
    %v1107 = vsub.f32 1.5, %v1106
    %v1108 = vmul.f32 %v1103, %v1107
    %vm1109 = vweird.f32 %v1101
    %vm1110 = vweird.f32 %v1103
    %vm1111 = vmor %vm1109, %vm1110
    %v1112 = vsel %vm1111, %v1103, %v1108
    %v1113 = vrsqrt.pop %v1102
    %v1114 = vmul.f32 %v1113, %v1102
    %v1115 = vmul.f32 %v1114, %v1113
    %v1116 = vmul.f32 0.5, %v1115
    %v1117 = vsub.f32 1.5, %v1116
    %v1118 = vmul.f32 %v1113, %v1117
    %vm1119 = vweird.f32 %v1102
    %vm1120 = vweird.f32 %v1113
    %vm1121 = vmor %vm1119, %vm1120
    %v1122 = vsel %vm1121, %v1113, %v1118
    %v1123 = vmul.f32 %v1089, %v1112
    %v1124 = vmul.f32 %v1090, %v1122
    %v1126 = vperm.slane %v1079, 0
    %v1128 = vmul.f32 %v1123, %v1126
    %v1129 = vmul.f32 %v1124, %v1126
    %v1131 = vperm.slane %v1080, 0
    %v1133 = vadd.f32 %v1128, %v1131
    %v1134 = vadd.f32 %v1129, %v1131
    %s1135 = scalar_lea.vmem %s29, 32
    %v1136 = vld [vmem:[%s1135] sm:$0xff]
    %v1137 = vld [vmem:[%s1135 + $0x8] sm:$0xff]
    %v1138 = vld [vmem:[%s1135 + $0x10] sm:$0xff]
    %v1139 = vld [vmem:[%s1135 + $0x18] sm:$0xff]
    %s1140 = scalar_lea.vmem [#allocation11], 1
    %v1141 = vld [vmem:[%s1140] sm:$0x1]
    %v1143 = vperm.slane %v1141, 0
    %v1146 = vsel %vm466, %v1133, 0
    %v1149 = vsel %vm466, %v1134, 0
    %1151 = vmatpush.msra.mxu0 0.0
    %1152 = vmatpush.msra.mxu0 0.0
    %1153 = vmatpush.msra.mxu0 0.0
    %1154 = vmatpush.msra.mxu0 0.0
    %1155 = vmatpush.msra.mxu0 0.0
    %1156 = vmatpush.msra.mxu0 0.0
    %1157 = vmatpush.msra.mxu0 0.0
    %1158 = vmatpush.msra.mxu0 0.0
    %1159 = vmatpush.msra.mxu0 0.0
    %1160 = vmatpush.msra.mxu0 0.0
    %1161 = vmatpush.msra.mxu0 0.0
    %1162 = vmatpush.msra.mxu0 0.0
    %1163 = vmatpush.msra.mxu0 %v1139
    %1164 = vmatpush.msra.mxu0 %v1138
    %1165 = vmatpush.msra.mxu0 %v1137
    %1166 = vmatpush.msra.mxu0 %v1136
    %1167 = vmatmul.f32.gmra.mxu0 %v1146
    %v1168 = vpop.f32.mrf.mxu0
    %v1169 = vadd.f32 %v1143, %v1168
    %1170 = vmatmul.f32.gmra.mxu0 %v1149
    %v1171 = vpop.f32.mrf.mxu0
    %v1172 = vadd.f32 %v1143, %v1171
    %1173 = vdwg.mxu0
    %1176 = vrot.lane.b32.xlu0 %v1169, 96
    %v1177 = vpop.permute.xlu0 %1176
    %1178 = vrot.lane.b32.xlu0 %v1172, 96
    %v1179 = vpop.permute.xlu0 %1178
    %1182 = vmatpush.msra.mxu0 0.0
    %1183 = vmatpush.msra.mxu0 0.0
    %1184 = vmatpush.msra.mxu0 0.0
    %1185 = vmatpush.msra.mxu0 0.0
    %1186 = vmatpush.msra.mxu0 0.0
    %1187 = vmatpush.msra.mxu0 0.0
    %1188 = vmatpush.msra.mxu0 0.0
    %1189 = vmatpush.msra.mxu0 0.0
    %1190 = vmatpush.msra.mxu0 0.0
    %1191 = vmatpush.msra.mxu0 0.0
    %1192 = vmatpush.msra.mxu0 0.0
    %1193 = vmatpush.msra.mxu0 0.0
    %1194 = vmatpush.msra.mxu0 0.0
    %1195 = vmatpush.msra.mxu0 0.0
    %1196 = vmatpush.msra.mxu0 %v1179
    %1197 = vmatpush.msra.mxu0 %v1177
    %1198 = vmatmul.f32.gmra.mxu0 %v559
    %v1199 = vpop.f32.mrf.mxu0
    %v1200 = vadd.f32 0.0, %v1199
    %1201 = vmatmul.f32.gmra.mxu0 %v562
    %v1202 = vpop.f32.mrf.mxu0
    %v1203 = vadd.f32 0.0, %v1202
    %1204 = vmatmul.f32.gmra.mxu0 %v565
    %v1205 = vpop.f32.mrf.mxu0
    %v1206 = vadd.f32 0.0, %v1205
    %1207 = vmatmul.f32.gmra.mxu0 %v568
    %v1208 = vpop.f32.mrf.mxu0
    %v1209 = vadd.f32 0.0, %v1208
    %1210 = vmatmul.f32.gmra.mxu0 %v571
    %v1211 = vpop.f32.mrf.mxu0
    %v1212 = vadd.f32 0.0, %v1211
    %1213 = vmatmul.f32.gmra.mxu0 %v574
    %v1214 = vpop.f32.mrf.mxu0
    %v1215 = vadd.f32 0.0, %v1214
    %1216 = vmatmul.f32.gmra.mxu0 %v577
    %v1217 = vpop.f32.mrf.mxu0
    %v1218 = vadd.f32 0.0, %v1217
    %1219 = vmatmul.f32.gmra.mxu0 %v580
    %v1220 = vpop.f32.mrf.mxu0
    %v1221 = vadd.f32 0.0, %v1220
    %1222 = vdwg.mxu0
    %v1223 = vmul.f32 %v1200, %v536
    %v1224 = vmul.f32 %v1203, %v537
    %v1225 = vmul.f32 %v1206, %v538
    %v1226 = vmul.f32 %v1209, %v539
    %v1227 = vmul.f32 %v1212, %v540
    %v1228 = vmul.f32 %v1215, %v541
    %v1229 = vmul.f32 %v1218, %v542
    %v1230 = vmul.f32 %v1221, %v543
    %1231 = vrot.lane.b32.xlu0 %v1169, 64
    %v1232 = vpop.permute.xlu0 %1231
    %1233 = vrot.lane.b32.xlu0 %v1172, 64
    %v1234 = vpop.permute.xlu0 %1233
    %1237 = vmatpush.msra.mxu0 0.0
    %1238 = vmatpush.msra.mxu0 0.0
    %1239 = vmatpush.msra.mxu0 0.0
    %1240 = vmatpush.msra.mxu0 0.0
    %1241 = vmatpush.msra.mxu0 0.0
    %1242 = vmatpush.msra.mxu0 0.0
    %1243 = vmatpush.msra.mxu0 0.0
    %1244 = vmatpush.msra.mxu0 0.0
    %1245 = vmatpush.msra.mxu0 0.0
    %1246 = vmatpush.msra.mxu0 0.0
    %1247 = vmatpush.msra.mxu0 0.0
    %1248 = vmatpush.msra.mxu0 0.0
    %1249 = vmatpush.msra.mxu0 0.0
    %1250 = vmatpush.msra.mxu0 0.0
    %1251 = vmatpush.msra.mxu0 %v1234
    %1252 = vmatpush.msra.mxu0 %v1232
    %1253 = vmatmul.f32.gmra.mxu0 %v559
    %v1254 = vpop.f32.mrf.mxu0
    %v1255 = vadd.f32 0.0, %v1254
    %1256 = vmatmul.f32.gmra.mxu0 %v562
    %v1257 = vpop.f32.mrf.mxu0
    %v1258 = vadd.f32 0.0, %v1257
    %1259 = vmatmul.f32.gmra.mxu0 %v565
    %v1260 = vpop.f32.mrf.mxu0
    %v1261 = vadd.f32 0.0, %v1260
    %1262 = vmatmul.f32.gmra.mxu0 %v568
    %v1263 = vpop.f32.mrf.mxu0
    %v1264 = vadd.f32 0.0, %v1263
    %1265 = vmatmul.f32.gmra.mxu0 %v571
    %v1266 = vpop.f32.mrf.mxu0
    %v1267 = vadd.f32 0.0, %v1266
    %1268 = vmatmul.f32.gmra.mxu0 %v574
    %v1269 = vpop.f32.mrf.mxu0
    %v1270 = vadd.f32 0.0, %v1269
    %1271 = vmatmul.f32.gmra.mxu0 %v577
    %v1272 = vpop.f32.mrf.mxu0
    %v1273 = vadd.f32 0.0, %v1272
    %1274 = vmatmul.f32.gmra.mxu0 %v580
    %v1275 = vpop.f32.mrf.mxu0
    %v1276 = vadd.f32 0.0, %v1275
    %1277 = vdwg.mxu0
    %v1278 = vmul.f32 %v1255, %v536
    %v1279 = vmul.f32 %v1258, %v537
    %v1280 = vmul.f32 %v1261, %v538
    %v1281 = vmul.f32 %v1264, %v539
    %v1282 = vmul.f32 %v1267, %v540
    %v1283 = vmul.f32 %v1270, %v541
    %v1284 = vmul.f32 %v1273, %v542
    %v1285 = vmul.f32 %v1276, %v543
    %v1286 = vsel %vm466, %v1169, 0
    %v1288 = vsel %vm466, %v1172, 0
    %v1291 = vsel %vm466, %v1223, 0
    %v1294 = vsel %vm466, %v1224, 0
    %v1297 = vsel %vm466, %v1225, 0
    %v1300 = vsel %vm466, %v1226, 0
    %v1303 = vsel %vm466, %v1227, 0
    %v1306 = vsel %vm466, %v1228, 0
    %v1309 = vsel %vm466, %v1229, 0
    %v1312 = vsel %vm466, %v1230, 0
    %1314 = vmatpush.xpose.msra.mxu0 0.0
    %1315 = vmatpush.xpose.msra.mxu0 0.0
    %1316 = vmatpush.xpose.msra.mxu0 0.0
    %1317 = vmatpush.xpose.msra.mxu0 0.0
    %1318 = vmatpush.xpose.msra.mxu0 0.0
    %1319 = vmatpush.xpose.msra.mxu0 0.0
    %1320 = vmatpush.xpose.msra.mxu0 0.0
    %1321 = vmatpush.xpose.msra.mxu0 0.0
    %1322 = vmatpush.xpose.msra.mxu0 %v1312
    %1323 = vmatpush.xpose.msra.mxu0 %v1309
    %1324 = vmatpush.xpose.msra.mxu0 %v1306
    %1325 = vmatpush.xpose.msra.mxu0 %v1303
    %1326 = vmatpush.xpose.msra.mxu0 %v1300
    %1327 = vmatpush.xpose.msra.mxu0 %v1297
    %1328 = vmatpush.xpose.msra.mxu0 %v1294
    %1329 = vmatpush.xpose.msra.mxu0 %v1291
    %1330 = vmatmul.f32.gmra.mxu0 %v1286
    %v1331 = vpop.f32.mrf.mxu0
    %v1332 = vadd.f32 %v609, %v1331
    %1333 = vmatmul.f32.gmra.mxu0 %v1288
    %v1334 = vpop.f32.mrf.mxu0
    %v1335 = vadd.f32 %v610, %v1334
    %1336 = vdwg.mxu0
    %v1337 = vsel %vm811, %v1332, -inf
    %1338 = vmax.xlane.f32.xlu0 %v1337
    %v1339 = vpop.xlane.xlu0 %1338
    %v1340 = vsel %vm811, %v1335, -inf
    %1341 = vmax.xlane.f32.xlu0 %v1340
    %v1342 = vpop.xlane.xlu0 %1341
    %v1343 = vsub.f32 %v1332, %v1339
    %v1344 = vsub.f32 %v1335, %v1342
    %v1345 = vmul.f32 %v1343, 1.442695
    %v1346 = vpow.pop %v1345
    %v1347 = vmul.f32 %v1344, 1.442695
    %v1348 = vpow.pop %v1347
    %v1350 = vsel %vm811, %v1346, 0
    %v1353 = vsel %vm811, %v1348, 0
    %1355 = vmatpush.msra.mxu0 0.0
    %1356 = vmatpush.msra.mxu0 0.0
    %1357 = vmatpush.msra.mxu0 0.0
    %1358 = vmatpush.msra.mxu0 0.0
    %1359 = vmatpush.msra.mxu0 0.0
    %1360 = vmatpush.msra.mxu0 0.0
    %1361 = vmatpush.msra.mxu0 0.0
    %1362 = vmatpush.msra.mxu0 0.0
    %1363 = vmatpush.msra.mxu0 %v551
    %1364 = vmatpush.msra.mxu0 %v550
    %1365 = vmatpush.msra.mxu0 %v549
    %1366 = vmatpush.msra.mxu0 %v548
    %1367 = vmatpush.msra.mxu0 %v547
    %1368 = vmatpush.msra.mxu0 %v546
    %1369 = vmatpush.msra.mxu0 %v545
    %1370 = vmatpush.msra.mxu0 %v544
    %1371 = vmatmul.f32.gmra.mxu0 %v1350
    %v1372 = vpop.f32.mrf.mxu0
    %v1373 = vadd.f32 %v552, %v1372
    %1374 = vmatmul.f32.gmra.mxu0 %v1353
    %v1375 = vpop.f32.mrf.mxu0
    %v1376 = vadd.f32 %v553, %v1375
    %1377 = vdwg.mxu0
    %v1378 = vrcp.pop %v1373
    %v1379 = vrcp.pop %v1376
    %v1380 = vmul.f32 %v1346, %v1378
    %v1381 = vmul.f32 %v1348, %v1379
    %v1383 = vsel %vm811, %v1380, 0
    %v1386 = vsel %vm811, %v1381, 0
    %1388 = vmatpush.msra.mxu0 0.0
    %1389 = vmatpush.msra.mxu0 0.0
    %1390 = vmatpush.msra.mxu0 0.0
    %1391 = vmatpush.msra.mxu0 0.0
    %1392 = vmatpush.msra.mxu0 0.0
    %1393 = vmatpush.msra.mxu0 0.0
    %1394 = vmatpush.msra.mxu0 0.0
    %1395 = vmatpush.msra.mxu0 0.0
    %1396 = vmatpush.msra.mxu0 %v1285
    %1397 = vmatpush.msra.mxu0 %v1284
    %1398 = vmatpush.msra.mxu0 %v1283
    %1399 = vmatpush.msra.mxu0 %v1282
    %1400 = vmatpush.msra.mxu0 %v1281
    %1401 = vmatpush.msra.mxu0 %v1280
    %1402 = vmatpush.msra.mxu0 %v1279
    %1403 = vmatpush.msra.mxu0 %v1278
    %1404 = vmatmul.f32.gmra.mxu0 %v1383
    %v1405 = vpop.f32.mrf.mxu0
    %v1406 = vadd.f32 0.0, %v1405
    %1407 = vmatmul.f32.gmra.mxu0 %v1386
    %v1408 = vpop.f32.mrf.mxu0
    %v1409 = vadd.f32 0.0, %v1408
    %1410 = vdwg.mxu0
    %s1411 = scalar_lea.vmem %s33, 32
    %v1412 = vld [vmem:[%s1411] sm:$0xff]
    %v1413 = vld [vmem:[%s1411 + $0x8] sm:$0xff]
    %v1414 = vld [vmem:[%s1411 + $0x10] sm:$0xff]
    %v1415 = vld [vmem:[%s1411 + $0x18] sm:$0xff]
    %s1416 = scalar_lea.vmem [#allocation13], 1
    %v1417 = vld [vmem:[%s1416] sm:$0x1]
    %v1419 = vperm.slane %v1417, 0
    %v1422 = vsel %vm466, %v1406, 0
    %v1425 = vsel %vm466, %v1409, 0
    %1427 = vmatpush.msra.mxu0 0.0
    %1428 = vmatpush.msra.mxu0 0.0
    %1429 = vmatpush.msra.mxu0 0.0
    %1430 = vmatpush.msra.mxu0 0.0
    %1431 = vmatpush.msra.mxu0 0.0
    %1432 = vmatpush.msra.mxu0 0.0
    %1433 = vmatpush.msra.mxu0 0.0
    %1434 = vmatpush.msra.mxu0 0.0
    %1435 = vmatpush.msra.mxu0 0.0
    %1436 = vmatpush.msra.mxu0 0.0
    %1437 = vmatpush.msra.mxu0 0.0
    %1438 = vmatpush.msra.mxu0 0.0
    %1439 = vmatpush.msra.mxu0 %v1415
    %1440 = vmatpush.msra.mxu0 %v1414
    %1441 = vmatpush.msra.mxu0 %v1413
    %1442 = vmatpush.msra.mxu0 %v1412
    %1443 = vmatmul.f32.gmra.mxu0 %v1422
    %v1444 = vpop.f32.mrf.mxu0
    %v1445 = vadd.f32 %v1419, %v1444
    %1446 = vmatmul.f32.gmra.mxu0 %v1425
    %v1447 = vpop.f32.mrf.mxu0
    %v1448 = vadd.f32 %v1419, %v1447
    %1449 = vdwg.mxu0
    %v1450 = vadd.f32 %v1445, %v1133
    %v1451 = vadd.f32 %v1448, %v1134
    %s1452 = scalar_lea.vmem [#allocation14], 1
    %v1453 = vld [vmem:[%s1452] sm:$0x1]
    %s1454 = scalar_lea.vmem [#allocation16], 1
    %v1455 = vld [vmem:[%s1454] sm:$0x1]
    %v1456 = vsel %vm466, %v1450, 0.0
    %1457 = vadd.xlane.f32.xlu0 %v1456
    %v1458 = vpop.xlane.xlu0 %1457
    %v1459 = vsel %vm466, %v1451, 0.0
    %1460 = vadd.xlane.f32.xlu0 %v1459
    %v1461 = vpop.xlane.xlu0 %1460
    %v1462 = vmul.f32 %v1458, %v479
    %v1463 = vmul.f32 %v1461, %v479
    %v1464 = vsub.f32 %v1450, %v1462
    %v1465 = vsub.f32 %v1451, %v1463
    %v1466 = vmul.f32 %v1464, %v1464
    %v1467 = vmul.f32 %v1465, %v1465
    %v1468 = vsel %vm466, %v1466, 0.0
    %1469 = vadd.xlane.f32.xlu0 %v1468
    %v1470 = vpop.xlane.xlu0 %1469
    %v1471 = vsel %vm466, %v1467, 0.0
    %1472 = vadd.xlane.f32.xlu0 %v1471
    %v1473 = vpop.xlane.xlu0 %1472
    %v1474 = vmul.f32 %v1470, %v479
    %v1475 = vmul.f32 %v1473, %v479
    %v1476 = vadd.f32 %v1474, 1e-12
    %v1477 = vadd.f32 %v1475, 1e-12
    %v1478 = vrsqrt.pop %v1476
    %v1479 = vmul.f32 %v1478, %v1476
    %v1480 = vmul.f32 %v1479, %v1478
    %v1481 = vmul.f32 0.5, %v1480
    %v1482 = vsub.f32 1.5, %v1481
    %v1483 = vmul.f32 %v1478, %v1482
    %vm1484 = vweird.f32 %v1476
    %vm1485 = vweird.f32 %v1478
    %vm1486 = vmor %vm1484, %vm1485
    %v1487 = vsel %vm1486, %v1478, %v1483
    %v1488 = vrsqrt.pop %v1477
    %v1489 = vmul.f32 %v1488, %v1477
    %v1490 = vmul.f32 %v1489, %v1488
    %v1491 = vmul.f32 0.5, %v1490
    %v1492 = vsub.f32 1.5, %v1491
    %v1493 = vmul.f32 %v1488, %v1492
    %vm1494 = vweird.f32 %v1477
    %vm1495 = vweird.f32 %v1488
    %vm1496 = vmor %vm1494, %vm1495
    %v1497 = vsel %vm1496, %v1488, %v1493
    %v1498 = vmul.f32 %v1464, %v1487
    %v1499 = vmul.f32 %v1465, %v1497
    %v1501 = vperm.slane %v1453, 0
    %v1503 = vmul.f32 %v1498, %v1501
    %v1504 = vmul.f32 %v1499, %v1501
    %v1506 = vperm.slane %v1455, 0
    %v1508 = vadd.f32 %v1503, %v1506
    %v1509 = vadd.f32 %v1504, %v1506
    %s1510 = scalar_lea.vmem %s41, 32
    %v1511 = vld [vmem:[%s1510] sm:$0xff]
    %v1512 = vld [vmem:[%s1510 + $0x8] sm:$0xff]
    %v1513 = vld [vmem:[%s1510 + $0x10] sm:$0xff]
    %v1514 = vld [vmem:[%s1510 + $0x18] sm:$0xff]
    %s1515 = scalar_lea.vmem [#allocation17], 1
    %v1516 = vld [vmem:[%s1515] sm:$0x1]
    %v1518 = vperm.slane %v1516, 0
    %v1521 = vsel %vm466, %v1508, 0
    %v1524 = vsel %vm466, %v1509, 0
    %1526 = vmatpush.msra.mxu0 0.0
    %1527 = vmatpush.msra.mxu0 0.0
    %1528 = vmatpush.msra.mxu0 0.0
    %1529 = vmatpush.msra.mxu0 0.0
    %1530 = vmatpush.msra.mxu0 0.0
    %1531 = vmatpush.msra.mxu0 0.0
    %1532 = vmatpush.msra.mxu0 0.0
    %1533 = vmatpush.msra.mxu0 0.0
    %1534 = vmatpush.msra.mxu0 0.0
    %1535 = vmatpush.msra.mxu0 0.0
    %1536 = vmatpush.msra.mxu0 0.0
    %1537 = vmatpush.msra.mxu0 0.0
    %1538 = vmatpush.msra.mxu0 %v1514
    %1539 = vmatpush.msra.mxu0 %v1513
    %1540 = vmatpush.msra.mxu0 %v1512
    %1541 = vmatpush.msra.mxu0 %v1511
    %1542 = vmatmul.f32.gmra.mxu0 %v1521
    %v1543 = vpop.f32.mrf.mxu0
    %v1544 = vadd.f32 %v1518, %v1543
    %1545 = vmatmul.f32.gmra.mxu0 %v1524
    %v1546 = vpop.f32.mrf.mxu0
    %v1547 = vadd.f32 %v1518, %v1546
    %1548 = vdwg.mxu0
    %v1549 = vmul.f32 %v1544, 0.5
    %v1550 = vmul.f32 %v1547, 0.5
    %v1551 = vmul.f32 %v1544, 0.044715
    %v1552 = vmul.f32 %v1547, 0.044715
    %v1553 = vmul.f32 %v1551, %v1544
    %v1554 = vmul.f32 %v1552, %v1547
    %v1555 = vmul.f32 %v1553, %v1544
    %v1556 = vmul.f32 %v1554, %v1547
    %v1557 = vadd.f32 %v1544, %v1555
    %v1558 = vadd.f32 %v1547, %v1556
    %v1559 = vmul.f32 %v1557, 0.7978846
    %v1560 = vmul.f32 %v1558, 0.7978846
    %v1561 = vtanh.pop %v1559
    %v1562 = vtanh.pop %v1560
    %v1563 = vadd.f32 %v1561, 1.0
    %v1564 = vadd.f32 %v1562, 1.0
    %v1565 = vmul.f32 %v1549, %v1563
    %v1566 = vmul.f32 %v1550, %v1564
    %s1567 = scalar_lea.vmem %s45, 64
    %v1568 = vld [vmem:[%s1567] sm:$0xff]
    %v1569 = vld [vmem:[%s1567 + $0x8] sm:$0xff]
    %v1570 = vld [vmem:[%s1567 + $0x10] sm:$0xff]
    %v1571 = vld [vmem:[%s1567 + $0x18] sm:$0xff]
    %v1572 = vld [vmem:[%s1567 + $0x20] sm:$0xff]
    %v1573 = vld [vmem:[%s1567 + $0x28] sm:$0xff]
    %v1574 = vld [vmem:[%s1567 + $0x30] sm:$0xff]
    %v1575 = vld [vmem:[%s1567 + $0x38] sm:$0xff]
    %s1576 = scalar_lea.vmem [#allocation19], 1
    %v1577 = vld [vmem:[%s1576] sm:$0x1]
    %v1579 = vperm.slane %v1577, 0
    %v1582 = vsel %vm811, %v1565, 0
    %v1585 = vsel %vm811, %v1566, 0
    %1587 = vmatpush.msra.mxu0 0.0
    %1588 = vmatpush.msra.mxu0 0.0
    %1589 = vmatpush.msra.mxu0 0.0
    %1590 = vmatpush.msra.mxu0 0.0
    %1591 = vmatpush.msra.mxu0 0.0
    %1592 = vmatpush.msra.mxu0 0.0
    %1593 = vmatpush.msra.mxu0 0.0
    %1594 = vmatpush.msra.mxu0 0.0
    %1595 = vmatpush.msra.mxu0 %v1575
    %1596 = vmatpush.msra.mxu0 %v1574
    %1597 = vmatpush.msra.mxu0 %v1573
    %1598 = vmatpush.msra.mxu0 %v1572
    %1599 = vmatpush.msra.mxu0 %v1571
    %1600 = vmatpush.msra.mxu0 %v1570
    %1601 = vmatpush.msra.mxu0 %v1569
    %1602 = vmatpush.msra.mxu0 %v1568
    %1603 = vmatmul.f32.gmra.mxu0 %v1582
    %v1604 = vpop.f32.mrf.mxu0
    %v1605 = vadd.f32 %v1579, %v1604
    %1606 = vmatmul.f32.gmra.mxu0 %v1585
    %v1607 = vpop.f32.mrf.mxu0
    %v1608 = vadd.f32 %v1579, %v1607
    %1609 = vdwg.mxu0
    %v1610 = vadd.f32 %v1605, %v1508
    %v1611 = vadd.f32 %v1608, %v1509
    %s1612 = scalar_lea.vmem [#allocation20], 1
    %v1613 = vld [vmem:[%s1612] sm:$0x1]
    %s1614 = scalar_lea.vmem [#allocation22], 1
    %v1615 = vld [vmem:[%s1614] sm:$0x1]
    %v1616 = vsel %vm466, %v1610, 0.0
    %1617 = vadd.xlane.f32.xlu0 %v1616
    %v1618 = vpop.xlane.xlu0 %1617
    %v1619 = vsel %vm466, %v1611, 0.0
    %1620 = vadd.xlane.f32.xlu0 %v1619
    %v1621 = vpop.xlane.xlu0 %1620
    %v1622 = vmul.f32 %v1618, %v479
    %v1623 = vmul.f32 %v1621, %v479
    %v1624 = vsub.f32 %v1610, %v1622
    %v1625 = vsub.f32 %v1611, %v1623
    %v1626 = vmul.f32 %v1624, %v1624
    %v1627 = vmul.f32 %v1625, %v1625
    %v1628 = vsel %vm466, %v1626, 0.0
    %1629 = vadd.xlane.f32.xlu0 %v1628
    %v1630 = vpop.xlane.xlu0 %1629
    %v1631 = vsel %vm466, %v1627, 0.0
    %1632 = vadd.xlane.f32.xlu0 %v1631
    %v1633 = vpop.xlane.xlu0 %1632
    %v1634 = vmul.f32 %v1630, %v479
    %v1635 = vmul.f32 %v1633, %v479
    %v1636 = vadd.f32 %v1634, 1e-12
    %v1637 = vadd.f32 %v1635, 1e-12
    %v1638 = vrsqrt.pop %v1636
    %v1639 = vmul.f32 %v1638, %v1636
    %v1640 = vmul.f32 %v1639, %v1638
    %v1641 = vmul.f32 0.5, %v1640
    %v1642 = vsub.f32 1.5, %v1641
    %v1643 = vmul.f32 %v1638, %v1642
    %vm1644 = vweird.f32 %v1636
    %vm1645 = vweird.f32 %v1638
    %vm1646 = vmor %vm1644, %vm1645
    %v1647 = vsel %vm1646, %v1638, %v1643
    %v1648 = vrsqrt.pop %v1637
    %v1649 = vmul.f32 %v1648, %v1637
    %v1650 = vmul.f32 %v1649, %v1648
    %v1651 = vmul.f32 0.5, %v1650
    %v1652 = vsub.f32 1.5, %v1651
    %v1653 = vmul.f32 %v1648, %v1652
    %vm1654 = vweird.f32 %v1637
    %vm1655 = vweird.f32 %v1648
    %vm1656 = vmor %vm1654, %vm1655
    %v1657 = vsel %vm1656, %v1648, %v1653
    %v1658 = vmul.f32 %v1624, %v1647
    %v1659 = vmul.f32 %v1625, %v1657
    %v1661 = vperm.slane %v1613, 0
    %v1663 = vmul.f32 %v1658, %v1661
    %v1664 = vmul.f32 %v1659, %v1661
    %v1666 = vperm.slane %v1615, 0
    %v1668 = vadd.f32 %v1663, %v1666
    %v1669 = vadd.f32 %v1664, %v1666
    %v1670 = vld [vmem:[#allocation7] sm:$0x3]
    %v1672 = vsel %vm389, %v1670, 0
    %1674 = vmatpush.msra.mxu0 0.0
    %1675 = vmatpush.msra.mxu0 0.0
    %1676 = vmatpush.msra.mxu0 0.0
    %1677 = vmatpush.msra.mxu0 0.0
    %1678 = vmatpush.msra.mxu0 0.0
    %1679 = vmatpush.msra.mxu0 0.0
    %1680 = vmatpush.msra.mxu0 0.0
    %1681 = vmatpush.msra.mxu0 0.0
    %1682 = vmatpush.msra.mxu0 0.0
    %1683 = vmatpush.msra.mxu0 0.0
    %1684 = vmatpush.msra.mxu0 0.0
    %1685 = vmatpush.msra.mxu0 0.0
    %1686 = vmatpush.msra.mxu0 0.0
    %1687 = vmatpush.msra.mxu0 0.0
    %1688 = vmatpush.msra.mxu0 %v1669
    %1689 = vmatpush.msra.mxu0 %v1668
    %1690 = vmatmul.f32.gmra.mxu0 %v1672
    %v1691 = vpop.f32.mrf.mxu0
    %v1692 = vadd.f32 0.0, %v1691
    %1693 = vdwg.mxu0
    %v1694 = vld [vmem:[#allocation23] sm:$0xff]
    %v1695 = vld [vmem:[#allocation23 + $0x8] sm:$0xff]
    %v1696 = vld [vmem:[#allocation23 + $0x10] sm:$0xff]
    %v1697 = vld [vmem:[#allocation23 + $0x18] sm:$0xff]
    %v1698 = vld [vmem:[#allocation25] sm:$0x1]
    %v1700 = vperm.slane %v1698, 0
    %v1703 = vsel %vm466, %v1692, 0
    %1705 = vmatpush.msra.mxu0 0.0
    %1706 = vmatpush.msra.mxu0 0.0
    %1707 = vmatpush.msra.mxu0 0.0
    %1708 = vmatpush.msra.mxu0 0.0
    %1709 = vmatpush.msra.mxu0 0.0
    %1710 = vmatpush.msra.mxu0 0.0
    %1711 = vmatpush.msra.mxu0 0.0
    %1712 = vmatpush.msra.mxu0 0.0
    %1713 = vmatpush.msra.mxu0 0.0
    %1714 = vmatpush.msra.mxu0 0.0
    %1715 = vmatpush.msra.mxu0 0.0
    %1716 = vmatpush.msra.mxu0 0.0
    %1717 = vmatpush.msra.mxu0 %v1697
    %1718 = vmatpush.msra.mxu0 %v1696
    %1719 = vmatpush.msra.mxu0 %v1695
    %1720 = vmatpush.msra.mxu0 %v1694
    %1721 = vmatmul.f32.gmra.mxu0 %v1703
    %v1722 = vpop.f32.mrf.mxu0
    %v1723 = vadd.f32 %v1700, %v1722
    %1724 = vdwg.mxu0
    %v1725 = vtanh.pop %v1723
    %v1726 = vld [vmem:[%s57] sm:$0xff]
    %v1727 = vld [vmem:[%s57 + $0x8] sm:$0xff]
    %v1728 = vld [vmem:[%s57 + $0x10] sm:$0xff]
    %v1729 = vld [vmem:[%s57 + $0x18] sm:$0xff]
    %v1730 = vld [vmem:[#allocation2] sm:$0x1]
    %v1732 = vperm.slane %v1730, 0
    %v1735 = vsel %vm466, %v1725, 0
    %1737 = vmatpush.msra.mxu0 0.0
    %1738 = vmatpush.msra.mxu0 0.0
    %1739 = vmatpush.msra.mxu0 0.0
    %1740 = vmatpush.msra.mxu0 0.0
    %1741 = vmatpush.msra.mxu0 0.0
    %1742 = vmatpush.msra.mxu0 0.0
    %1743 = vmatpush.msra.mxu0 0.0
    %1744 = vmatpush.msra.mxu0 0.0
    %1745 = vmatpush.msra.mxu0 0.0
    %1746 = vmatpush.msra.mxu0 0.0
    %1747 = vmatpush.msra.mxu0 0.0
    %1748 = vmatpush.msra.mxu0 0.0
    %1749 = vmatpush.msra.mxu0 %v1729
    %1750 = vmatpush.msra.mxu0 %v1728
    %1751 = vmatpush.msra.mxu0 %v1727
    %1752 = vmatpush.msra.mxu0 %v1726
    %1753 = vmatmul.f32.gmra.mxu0 %v1735
    %v1754 = vpop.f32.mrf.mxu0
    %v1755 = vadd.f32 %v1732, %v1754
    %1756 = vdwg.mxu0
    %vm1757 = vcmask 1024
    %1758 = vst.msk [vmem:[%s61] sm:$0x3] %vm1757, %v1755
    // Predicated region
    $region182: #{bert_for_regression.1} parent=1 // pred_check
      _
    $region183: #{bert_for_regression.1} parent=1 // pred_check_branch
      %1760 = sbr.rel (0) target = $region185
    $region184: #{bert_for_regression.1} parent=1 // pred_region
      _
    $region185: #{bert_for_regression.1} parent=1 // pred_fallthru
      _
    // Predicated region
    $region186: #{bert_for_regression.1} parent=1 // pred_check
      _
    $region187: #{bert_for_regression.1} parent=1 // pred_check_branch
      %1762 = sbr.rel (0) target = $region189
    $region188: #{bert_for_regression.1} parent=1 // pred_region
      _
    $region189: #{bert_for_regression.1} parent=1 // pred_fallthru
      _
    %1763 = vsyncpa [#allocation4], 1
    %1764 = vsyncpa [#allocation6], 1
    %1765 = vsyncpa [#allocation9], 1
    %1766 = vsyncpa [#allocation12], 1
    %1767 = vsyncpa [#allocation15], 1
    %1768 = vsyncpa [#allocation18], 1
    %1769 = vsyncpa [#allocation21], 1
    %1770 = vsyncpa [#allocation24], 1

</llo_original>
